<compile_context>
chip_gen: v7x
topology: tpu7x:2x2x1
jax: 0.10.0
libtpu: 0.0.40
codegen_flags: <defaults>
</compile_context>

<pallas_src>
import math
from functools import partial

import jax
import jax.numpy as jnp
from jax.experimental import pallas as pl
from jax.experimental.pallas import tpu as pltpu


# --------------------------------------------------------------------------
# Fused EncoderLayer kernel:
#   MHSA -> add&norm -> conv1d(k=1) FFN -> add&norm [-> final LayerNorm]
# --------------------------------------------------------------------------
def encoder_layer_kernel(x_ref, *refs, n_heads, fuse_final_norm, exp_in_bf16):
    if fuse_final_norm:
        (wqkv_ref, bqkv_ref, wo_ref, bo_ref, g1_ref, be1_ref,
         w1_ref, b1_ref, w2_ref, b2_ref, g2_ref, be2_ref,
         gf_ref, bf_ref, out_ref) = refs
    else:
        (wqkv_ref, bqkv_ref, wo_ref, bo_ref, g1_ref, be1_ref,
         w1_ref, b1_ref, w2_ref, b2_ref, g2_ref, be2_ref,
         out_ref) = refs

    bt, L, D = x_ref.shape
    H = n_heads
    E = D // H
    scale = 1.0 / math.sqrt(E)

    # Residual path / LN stats kept in f32; matmul operands bf16 with f32 acc.
    x_f32 = x_ref[...].reshape(bt * L, D).astype(jnp.float32)       # (R, D)
    x_bf = x_f32.astype(jnp.bfloat16)

    # ---- fused QKV projection: one MXU pass, N = 3*D (weights pre-cast bf16)
    qkv = jnp.dot(x_bf, wqkv_ref[...],
                  preferred_element_type=jnp.float32) + bqkv_ref[...]   # (R, 3D) f32
    q = qkv[:, :D].astype(jnp.bfloat16)
    k = qkv[:, D:2 * D].astype(jnp.bfloat16)
    v = qkv[:, 2 * D:].astype(jnp.bfloat16)

    wo = wo_ref[...]                                                 # (D, D) bf16

    # ---- per-(batch, head) attention, folded into the output projection -----
    # Lane slices of q/k/v feed the matmuls directly (vector loads, no masked
    # scratch stores); wo is consumed as sublane-aligned (E multiple of 8) row
    # slices, so no head-merge relayout is needed.  Scores are one (L, L)
    # tensor at a time instead of a monolithic (G, L, L) blob.
    per_b = []
    for b in range(bt):
        rows = slice(b * L, (b + 1) * L)
        acc = None
        for h in range(H):
            cols = slice(h * E, (h + 1) * E)
            qh = q[rows, cols]                                       # (L, E) bf16
            kh = k[rows, cols]
            vh = v[rows, cols]

            s = jnp.einsum('le,se->ls', qh, kh,
                           preferred_element_type=jnp.float32) * scale   # (L, L) f32
            s = s - jnp.max(s, axis=-1, keepdims=True)
            if exp_in_bf16:
                # bf16 EUP exp (v6e/v7x): ~2x exp throughput; row stats in f32.
                p = jnp.exp(s.astype(jnp.bfloat16))
                denom = jnp.sum(p.astype(jnp.float32), axis=-1, keepdims=True)
                p = p * pl.reciprocal(denom, approx=True).astype(jnp.bfloat16)
            else:
                pf = jnp.exp(s)                                      # f32 (v5e-safe)
                pf = pf * pl.reciprocal(jnp.sum(pf, axis=-1, keepdims=True),
                                        approx=True)
                p = pf.astype(jnp.bfloat16)

            ctx = jnp.dot(p, vh, preferred_element_type=jnp.float32)     # (L, E)
            # Fold this head directly into the output projection.
            part = jnp.dot(ctx.astype(jnp.bfloat16), wo[cols, :],
                           preferred_element_type=jnp.float32)           # (L, D)
            acc = part if acc is None else acc + part
        per_b.append(acc)

    new_x = per_b[0] if bt == 1 else jnp.concatenate(per_b, axis=0)   # (R, D)
    new_x = new_x + bo_ref[...]

    # ---- residual + LayerNorm1 (dropout omitted: inference) ------------------
    x1 = x_f32 + new_x
    mu1 = jnp.mean(x1, axis=-1, keepdims=True)
    var1 = jnp.mean((x1 - mu1) ** 2, axis=-1, keepdims=True)
    y = (x1 - mu1) * jax.lax.rsqrt(var1 + 1e-5) * g1_ref[...] + be1_ref[...]

    # ---- position-wise FFN: conv1d(k=1) -> relu -> conv1d(k=1) ---------------
    h1 = jnp.dot(y.astype(jnp.bfloat16), w1_ref[...],
                 preferred_element_type=jnp.float32) + b1_ref[...]
    h1 = jnp.maximum(h1, 0.0)          # TODO(synk): activation='gelu' variant
    h2 = jnp.dot(h1.astype(jnp.bfloat16), w2_ref[...],
                 preferred_element_type=jnp.float32) + b2_ref[...]

    # ---- residual + LayerNorm2 ------------------------------------------------
    x2 = y + h2
    mu2 = jnp.mean(x2, axis=-1, keepdims=True)
    var2 = jnp.mean((x2 - mu2) ** 2, axis=-1, keepdims=True)
    out = (x2 - mu2) * jax.lax.rsqrt(var2 + 1e-5) * g2_ref[...] + be2_ref[...]

    # ---- Encoder's trailing LayerNorm fused into the last layer ---------------
    if fuse_final_norm:
        muf = jnp.mean(out, axis=-1, keepdims=True)
        varf = jnp.mean((out - muf) ** 2, axis=-1, keepdims=True)
        out = (out - muf) * jax.lax.rsqrt(varf + 1e-5) * gf_ref[...] + bf_ref[...]

    # Single lane-dense store slab (no per-b store loop).
    out_ref[...] = out.reshape(bt, L, D).astype(out_ref.dtype)


def encoder_layer(x, params, *, n_heads, final_norm=None, batch_block=1,
                  exp_in_bf16=False, out_dtype=None,
                  vmem_limit_bytes=64 * 1024 * 1024):
    """One DUET EncoderLayer. x: (B, L, D). Returns (out, None)."""
    B, L, D = x.shape
    assert B % batch_block == 0 and D % n_heads == 0
    bt = batch_block

    # Pre-cast matmul weights to bf16 ONCE in the wrapper (not per grid step).
    wqkv = params["wqkv"].astype(jnp.bfloat16)
    wo = params["wo"].astype(jnp.bfloat16)
    w1 = params["w1"].astype(jnp.bfloat16)
    w2 = params["w2"].astype(jnp.bfloat16)

    weights = [wqkv, params["bqkv"], wo, params["bo"],
               params["g1"], params["be1"], w1, params["b1"],
               w2, params["b2"], params["g2"], params["be2"]]
    fuse = final_norm is not None
    if fuse:
        weights += [final_norm["g"], final_norm["b"]]

    def wspec(w):
        # Whole-array block with constant index_map: VMEM-resident across the
        # batch grid (no re-DMA per step).
        # TODO(synk): pipeline_mode=pl.Buffered(1) to drop the second buffer.
        nd = w.ndim
        return pl.BlockSpec(w.shape, lambda i, _nd=nd: (0,) * _nd)

    in_specs = [pl.BlockSpec((bt, L, D), lambda i: (i, 0, 0))] + \
               [wspec(w) for w in weights]
    out_specs = pl.BlockSpec((bt, L, D), lambda i: (i, 0, 0))

    out = pl.pallas_call(
        partial(encoder_layer_kernel, n_heads=n_heads,
                fuse_final_norm=fuse, exp_in_bf16=exp_in_bf16),
        out_shape=jax.ShapeDtypeStruct((B, L, D), out_dtype or x.dtype),
        grid=(B // bt,),
        in_specs=in_specs,
        out_specs=out_specs,
        compiler_params=pltpu.CompilerParams(
            dimension_semantics=("parallel",),
            vmem_limit_bytes=vmem_limit_bytes),
    )(x, *weights)
    return out, None   # attn is None (FullAttention output_attention=False)


# --------------------------------------------------------------------------
# Encoder: stack of attn layers (conv_layers=None branch) + fused final norm
# --------------------------------------------------------------------------
def encoder(x, layer_params, norm_params=None, *, n_heads, batch_block=1,
            exp_in_bf16=False, activation_dtype=None,
            vmem_limit_bytes=64 * 1024 * 1024):
    assert len(layer_params) >= 1
    final_dtype = x.dtype
    attns = []
    n = len(layer_params)
    for i, p in enumerate(layer_params):
        is_last = (i == n - 1)
        fn = norm_params if (is_last and norm_params is not None) else None
        # Inter-layer activations may be bf16 (halves the HBM round trip);
        # the final output keeps the caller's dtype.
        od = final_dtype if is_last else (activation_dtype or final_dtype)
        x, attn = encoder_layer(x, p, n_heads=n_heads, final_norm=fn,
                                batch_block=batch_block,
                                exp_in_bf16=exp_in_bf16, out_dtype=od,
                                vmem_limit_bytes=vmem_limit_bytes)
        attns.append(attn)
    return x, attns


# --------------------------------------------------------------------------
# Parameter init (mirrors PyTorch defaults; QKV pre-fused into one weight)
# --------------------------------------------------------------------------
def init_layer_params(key, d_model, d_ff, n_heads):
    ks = jax.random.split(key, 10)
    s = 1.0 / math.sqrt(d_model)
    sf = 1.0 / math.sqrt(d_ff)
    wq = jax.random.uniform(ks[0], (d_model, d_model), jnp.float32, -s, s)
    wk = jax.random.uniform(ks[1], (d_model, d_model), jnp.float32, -s, s)
    wv = jax.random.uniform(ks[2], (d_model, d_model), jnp.float32, -s, s)
    bq = jax.random.uniform(ks[3], (1, d_model), jnp.float32, -s, s)
    bk = jax.random.uniform(ks[4], (1, d_model), jnp.float32, -s, s)
    bv = jax.random.uniform(ks[5], (1, d_model), jnp.float32, -s, s)
    return {
        "wqkv": jnp.concatenate([wq, wk, wv], axis=1),        # (D, 3D)
        "bqkv": jnp.concatenate([bq, bk, bv], axis=1),        # (1, 3D)
        "wo": jax.random.uniform(ks[6], (d_model, d_model), jnp.float32, -s, s),
        "bo": jax.random.uniform(ks[7], (1, d_model), jnp.float32, -s, s),
        "g1": jnp.ones((1, d_model), jnp.float32),
        "be1": jnp.zeros((1, d_model), jnp.float32),
        # conv1: Conv1d(d_model -> d_ff, k=1) == linear (d_model, d_ff)
        "w1": jax.random.uniform(ks[8], (d_model, d_ff), jnp.float32, -s, s),
        "b1": jnp.zeros((1, d_ff), jnp.float32),
        # conv2: Conv1d(d_ff -> d_model, k=1) == linear (d_ff, d_model)
        "w2": jax.random.uniform(ks[9], (d_ff, d_model), jnp.float32, -sf, sf),
        "b2": jnp.zeros((1, d_model), jnp.float32),
        "g2": jnp.ones((1, d_model), jnp.float32),
        "be2": jnp.zeros((1, d_model), jnp.float32),
    }


if __name__ == "__main__":
    B, L, d_model, n_heads, n_layers = 2, 8, 32, 4, 2
    d_ff = 4 * d_model  # 128

    key = jax.random.PRNGKey(0)
    kx, kp = jax.random.split(key)
    x = jax.random.normal(kx, (B, L, d_model), jnp.float32)

    layer_keys = jax.random.split(kp, n_layers)
    layer_params = [init_layer_params(k, d_model, d_ff, n_heads)
                    for k in layer_keys]
    norm_params = {"g": jnp.ones((1, d_model), jnp.float32),
                   "b": jnp.zeros((1, d_model), jnp.float32)}

    # exp_in_bf16=True on v6e/v7x doubles EUP exp throughput; keep False for a
    # chip-agnostic f32 exp path (v5e has no bf16 EUP).
    out, attns = encoder(x, layer_params, norm_params, n_heads=n_heads,
                         batch_block=1, exp_in_bf16=False)
    out = jax.block_until_ready(out)

    assert out.shape == (B, L, d_model)
    assert bool(jnp.all(jnp.isfinite(out)))
    assert len(attns) == n_layers and all(a is None for a in attns)
    print("KERNEL_OK")
</pallas_src>

<mosaic_0001>
module attributes {stable_mosaic.version = 11 : i64} {
  func.func @encoder_layer_kernel(%arg0: i32, %arg1: memref<1x8x32xf32, #tpu.memory_space<vmem>>, %arg2: memref<32x96xbf16, #tpu.memory_space<vmem>>, %arg3: memref<1x96xf32, #tpu.memory_space<vmem>>, %arg4: memref<32x32xbf16, #tpu.memory_space<vmem>>, %arg5: memref<1x32xf32, #tpu.memory_space<vmem>>, %arg6: memref<1x32xf32, #tpu.memory_space<vmem>>, %arg7: memref<1x32xf32, #tpu.memory_space<vmem>>, %arg8: memref<32x128xbf16, #tpu.memory_space<vmem>>, %arg9: memref<1x128xf32, #tpu.memory_space<vmem>>, %arg10: memref<128x32xbf16, #tpu.memory_space<vmem>>, %arg11: memref<1x32xf32, #tpu.memory_space<vmem>>, %arg12: memref<1x32xf32, #tpu.memory_space<vmem>>, %arg13: memref<1x32xf32, #tpu.memory_space<vmem>>, %arg14: memref<1x8x32xf32, #tpu.memory_space<vmem>>) attributes {dimension_semantics = [#tpu.dimension_semantics<parallel>], iteration_bounds = array<i64: 2>, scalar_prefetch = 0 : i64, scratch_operands = 0 : i64, tpu.core_type = #tpu.core_type<tc>, window_params = [{transform_indices = @transform_0, window_bounds = array<i64: 1, 8, 32>}, {pipeline_mode = #tpu.pipeline_mode<synchronous>, transform_indices = @transform_1, window_bounds = array<i64: 32, 96>}, {pipeline_mode = #tpu.pipeline_mode<synchronous>, transform_indices = @transform_2, window_bounds = array<i64: 1, 96>}, {pipeline_mode = #tpu.pipeline_mode<synchronous>, transform_indices = @transform_3, window_bounds = array<i64: 32, 32>}, {pipeline_mode = #tpu.pipeline_mode<synchronous>, transform_indices = @transform_4, window_bounds = array<i64: 1, 32>}, {pipeline_mode = #tpu.pipeline_mode<synchronous>, transform_indices = @transform_5, window_bounds = array<i64: 1, 32>}, {pipeline_mode = #tpu.pipeline_mode<synchronous>, transform_indices = @transform_6, window_bounds = array<i64: 1, 32>}, {pipeline_mode = #tpu.pipeline_mode<synchronous>, transform_indices = @transform_7, window_bounds = array<i64: 32, 128>}, {pipeline_mode = #tpu.pipeline_mode<synchronous>, transform_indices = @transform_8, window_bounds = array<i64: 1, 128>}, {pipeline_mode = #tpu.pipeline_mode<synchronous>, transform_indices = @transform_9, window_bounds = array<i64: 128, 32>}, {pipeline_mode = #tpu.pipeline_mode<synchronous>, transform_indices = @transform_10, window_bounds = array<i64: 1, 32>}, {pipeline_mode = #tpu.pipeline_mode<synchronous>, transform_indices = @transform_11, window_bounds = array<i64: 1, 32>}, {pipeline_mode = #tpu.pipeline_mode<synchronous>, transform_indices = @transform_12, window_bounds = array<i64: 1, 32>}, {transform_indices = @transform_13, window_bounds = array<i64: 1, 8, 32>}]} {
    %c0 = arith.constant 0 : index
    %c0_0 = arith.constant 0 : index
    %c0_1 = arith.constant 0 : index
    %0 = vector.load %arg1[%c0, %c0_0, %c0_1] : memref<1x8x32xf32, #tpu.memory_space<vmem>>, vector<1x8x32xf32>
    %1 = vector.shape_cast %0 : vector<1x8x32xf32> to vector<8x32xf32>
    %2 = arith.truncf %1 : vector<8x32xf32> to vector<8x32xbf16>
    %c0_2 = arith.constant 0 : index
    %c0_3 = arith.constant 0 : index
    %3 = vector.load %arg2[%c0_2, %c0_3] : memref<32x96xbf16, #tpu.memory_space<vmem>>, vector<32x96xbf16>
    %cst = arith.constant dense<0.000000e+00> : vector<8x96xf32>
    %4 = tpu.matmul %2, %3, %cst {dimension_numbers = #tpu.dot_dimension_numbers<[1], [0], [0], [1], [0, 0, 1, 1], [], []>} : vector<8x32xbf16>, vector<32x96xbf16>, vector<8x96xf32> -> vector<8x96xf32>
    %c0_4 = arith.constant 0 : index
    %c0_5 = arith.constant 0 : index
    %5 = vector.load %arg3[%c0_4, %c0_5] : memref<1x96xf32, #tpu.memory_space<vmem>>, vector<1x96xf32>
    %6 = vector.broadcast %5 : vector<1x96xf32> to vector<8x96xf32>
    %7 = arith.addf %4, %6 : vector<8x96xf32>
    %8 = vector.extract_strided_slice %7 {offsets = [0, 0], sizes = [8, 32], strides = [1, 1]} : vector<8x96xf32> to vector<8x32xf32>
    %9 = arith.truncf %8 : vector<8x32xf32> to vector<8x32xbf16>
    %10 = vector.extract_strided_slice %7 {offsets = [0, 32], sizes = [8, 32], strides = [1, 1]} : vector<8x96xf32> to vector<8x32xf32>
    %11 = arith.truncf %10 : vector<8x32xf32> to vector<8x32xbf16>
    %12 = vector.extract_strided_slice %7 {offsets = [0, 64], sizes = [8, 32], strides = [1, 1]} : vector<8x96xf32> to vector<8x32xf32>
    %13 = arith.truncf %12 : vector<8x32xf32> to vector<8x32xbf16>
    %c0_6 = arith.constant 0 : index
    %c0_7 = arith.constant 0 : index
    %14 = vector.load %arg4[%c0_6, %c0_7] : memref<32x32xbf16, #tpu.memory_space<vmem>>, vector<32x32xbf16>
    %15 = vector.extract_strided_slice %9 {offsets = [0, 0], sizes = [8, 8], strides = [1, 1]} : vector<8x32xbf16> to vector<8x8xbf16>
    %16 = vector.extract_strided_slice %11 {offsets = [0, 0], sizes = [8, 8], strides = [1, 1]} : vector<8x32xbf16> to vector<8x8xbf16>
    %17 = vector.extract_strided_slice %13 {offsets = [0, 0], sizes = [8, 8], strides = [1, 1]} : vector<8x32xbf16> to vector<8x8xbf16>
    "tpu.trace_start"() <{level = 10 : i32, message = "le,se->ls"}> : () -> ()
    %cst_8 = arith.constant dense<0.000000e+00> : vector<8x8xf32>
    %18 = tpu.matmul %15, %16, %cst_8 {dimension_numbers = #tpu.dot_dimension_numbers<[1], [1], [0], [0], [0, 0, 1, 0], [], []>} : vector<8x8xbf16>, vector<8x8xbf16>, vector<8x8xf32> -> vector<8x8xf32>
    "tpu.trace_stop"() : () -> ()
    %cst_9 = arith.constant 0.353553385 : f32
    %19 = vector.broadcast %cst_9 : f32 to vector<8x8xf32>
    %20 = arith.mulf %18, %19 : vector<8x8xf32>
    %cst_10 = arith.constant dense<0xFF800000> : vector<8xf32>
    %21 = vector.multi_reduction <maximumf>, %20, %cst_10 [1] : vector<8x8xf32> to vector<8xf32>
    %22 = vector.shape_cast %21 : vector<8xf32> to vector<8x1xf32>
    %23 = vector.broadcast %22 : vector<8x1xf32> to vector<8x8xf32>
    %24 = arith.subf %20, %23 : vector<8x8xf32>
    %25 = math.exp %24 : vector<8x8xf32>
    %cst_11 = arith.constant dense<0.000000e+00> : vector<8xf32>
    %26 = vector.multi_reduction <add>, %25, %cst_11 [1] : vector<8x8xf32> to vector<8xf32>
    %27 = vector.shape_cast %26 : vector<8xf32> to vector<8x1xf32>
    %28 = tpu.reciprocal %27 {approx = true} : vector<8x1xf32> -> vector<8x1xf32>
    %29 = vector.broadcast %28 : vector<8x1xf32> to vector<8x8xf32>
    %30 = arith.mulf %25, %29 : vector<8x8xf32>
    %31 = arith.truncf %30 : vector<8x8xf32> to vector<8x8xbf16>
    %cst_12 = arith.constant dense<0.000000e+00> : vector<8x8xf32>
    %32 = tpu.matmul %31, %17, %cst_12 {dimension_numbers = #tpu.dot_dimension_numbers<[1], [0], [0], [1], [0, 0, 1, 1], [], []>} : vector<8x8xbf16>, vector<8x8xbf16>, vector<8x8xf32> -> vector<8x8xf32>
    %33 = arith.truncf %32 : vector<8x8xf32> to vector<8x8xbf16>
    %34 = vector.extract_strided_slice %14 {offsets = [0, 0], sizes = [8, 32], strides = [1, 1]} : vector<32x32xbf16> to vector<8x32xbf16>
    %cst_13 = arith.constant dense<0.000000e+00> : vector<8x32xf32>
    %35 = tpu.matmul %33, %34, %cst_13 {dimension_numbers = #tpu.dot_dimension_numbers<[1], [0], [0], [1], [0, 0, 1, 1], [], []>} : vector<8x8xbf16>, vector<8x32xbf16>, vector<8x32xf32> -> vector<8x32xf32>
    %36 = vector.extract_strided_slice %9 {offsets = [0, 8], sizes = [8, 8], strides = [1, 1]} : vector<8x32xbf16> to vector<8x8xbf16>
    %37 = vector.extract_strided_slice %11 {offsets = [0, 8], sizes = [8, 8], strides = [1, 1]} : vector<8x32xbf16> to vector<8x8xbf16>
    %38 = vector.extract_strided_slice %13 {offsets = [0, 8], sizes = [8, 8], strides = [1, 1]} : vector<8x32xbf16> to vector<8x8xbf16>
    "tpu.trace_start"() <{level = 10 : i32, message = "le,se->ls"}> : () -> ()
    %cst_14 = arith.constant dense<0.000000e+00> : vector<8x8xf32>
    %39 = tpu.matmul %36, %37, %cst_14 {dimension_numbers = #tpu.dot_dimension_numbers<[1], [1], [0], [0], [0, 0, 1, 0], [], []>} : vector<8x8xbf16>, vector<8x8xbf16>, vector<8x8xf32> -> vector<8x8xf32>
    "tpu.trace_stop"() : () -> ()
    %cst_15 = arith.constant 0.353553385 : f32
    %40 = vector.broadcast %cst_15 : f32 to vector<8x8xf32>
    %41 = arith.mulf %39, %40 : vector<8x8xf32>
    %cst_16 = arith.constant dense<0xFF800000> : vector<8xf32>
    %42 = vector.multi_reduction <maximumf>, %41, %cst_16 [1] : vector<8x8xf32> to vector<8xf32>
    %43 = vector.shape_cast %42 : vector<8xf32> to vector<8x1xf32>
    %44 = vector.broadcast %43 : vector<8x1xf32> to vector<8x8xf32>
    %45 = arith.subf %41, %44 : vector<8x8xf32>
    %46 = math.exp %45 : vector<8x8xf32>
    %cst_17 = arith.constant dense<0.000000e+00> : vector<8xf32>
    %47 = vector.multi_reduction <add>, %46, %cst_17 [1] : vector<8x8xf32> to vector<8xf32>
    %48 = vector.shape_cast %47 : vector<8xf32> to vector<8x1xf32>
    %49 = tpu.reciprocal %48 {approx = true} : vector<8x1xf32> -> vector<8x1xf32>
    %50 = vector.broadcast %49 : vector<8x1xf32> to vector<8x8xf32>
    %51 = arith.mulf %46, %50 : vector<8x8xf32>
    %52 = arith.truncf %51 : vector<8x8xf32> to vector<8x8xbf16>
    %cst_18 = arith.constant dense<0.000000e+00> : vector<8x8xf32>
    %53 = tpu.matmul %52, %38, %cst_18 {dimension_numbers = #tpu.dot_dimension_numbers<[1], [0], [0], [1], [0, 0, 1, 1], [], []>} : vector<8x8xbf16>, vector<8x8xbf16>, vector<8x8xf32> -> vector<8x8xf32>
    %54 = arith.truncf %53 : vector<8x8xf32> to vector<8x8xbf16>
    %55 = vector.extract_strided_slice %14 {offsets = [8, 0], sizes = [8, 32], strides = [1, 1]} : vector<32x32xbf16> to vector<8x32xbf16>
    %cst_19 = arith.constant dense<0.000000e+00> : vector<8x32xf32>
    %56 = tpu.matmul %54, %55, %cst_19 {dimension_numbers = #tpu.dot_dimension_numbers<[1], [0], [0], [1], [0, 0, 1, 1], [], []>} : vector<8x8xbf16>, vector<8x32xbf16>, vector<8x32xf32> -> vector<8x32xf32>
    %57 = arith.addf %35, %56 : vector<8x32xf32>
    %58 = vector.extract_strided_slice %9 {offsets = [0, 16], sizes = [8, 8], strides = [1, 1]} : vector<8x32xbf16> to vector<8x8xbf16>
    %59 = vector.extract_strided_slice %11 {offsets = [0, 16], sizes = [8, 8], strides = [1, 1]} : vector<8x32xbf16> to vector<8x8xbf16>
    %60 = vector.extract_strided_slice %13 {offsets = [0, 16], sizes = [8, 8], strides = [1, 1]} : vector<8x32xbf16> to vector<8x8xbf16>
    "tpu.trace_start"() <{level = 10 : i32, message = "le,se->ls"}> : () -> ()
    %cst_20 = arith.constant dense<0.000000e+00> : vector<8x8xf32>
    %61 = tpu.matmul %58, %59, %cst_20 {dimension_numbers = #tpu.dot_dimension_numbers<[1], [1], [0], [0], [0, 0, 1, 0], [], []>} : vector<8x8xbf16>, vector<8x8xbf16>, vector<8x8xf32> -> vector<8x8xf32>
    "tpu.trace_stop"() : () -> ()
    %cst_21 = arith.constant 0.353553385 : f32
    %62 = vector.broadcast %cst_21 : f32 to vector<8x8xf32>
    %63 = arith.mulf %61, %62 : vector<8x8xf32>
    %cst_22 = arith.constant dense<0xFF800000> : vector<8xf32>
    %64 = vector.multi_reduction <maximumf>, %63, %cst_22 [1] : vector<8x8xf32> to vector<8xf32>
    %65 = vector.shape_cast %64 : vector<8xf32> to vector<8x1xf32>
    %66 = vector.broadcast %65 : vector<8x1xf32> to vector<8x8xf32>
    %67 = arith.subf %63, %66 : vector<8x8xf32>
    %68 = math.exp %67 : vector<8x8xf32>
    %cst_23 = arith.constant dense<0.000000e+00> : vector<8xf32>
    %69 = vector.multi_reduction <add>, %68, %cst_23 [1] : vector<8x8xf32> to vector<8xf32>
    %70 = vector.shape_cast %69 : vector<8xf32> to vector<8x1xf32>
    %71 = tpu.reciprocal %70 {approx = true} : vector<8x1xf32> -> vector<8x1xf32>
    %72 = vector.broadcast %71 : vector<8x1xf32> to vector<8x8xf32>
    %73 = arith.mulf %68, %72 : vector<8x8xf32>
    %74 = arith.truncf %73 : vector<8x8xf32> to vector<8x8xbf16>
    %cst_24 = arith.constant dense<0.000000e+00> : vector<8x8xf32>
    %75 = tpu.matmul %74, %60, %cst_24 {dimension_numbers = #tpu.dot_dimension_numbers<[1], [0], [0], [1], [0, 0, 1, 1], [], []>} : vector<8x8xbf16>, vector<8x8xbf16>, vector<8x8xf32> -> vector<8x8xf32>
    %76 = arith.truncf %75 : vector<8x8xf32> to vector<8x8xbf16>
    %77 = vector.extract_strided_slice %14 {offsets = [16, 0], sizes = [8, 32], strides = [1, 1]} : vector<32x32xbf16> to vector<8x32xbf16>
    %cst_25 = arith.constant dense<0.000000e+00> : vector<8x32xf32>
    %78 = tpu.matmul %76, %77, %cst_25 {dimension_numbers = #tpu.dot_dimension_numbers<[1], [0], [0], [1], [0, 0, 1, 1], [], []>} : vector<8x8xbf16>, vector<8x32xbf16>, vector<8x32xf32> -> vector<8x32xf32>
    %79 = arith.addf %57, %78 : vector<8x32xf32>
    %80 = vector.extract_strided_slice %9 {offsets = [0, 24], sizes = [8, 8], strides = [1, 1]} : vector<8x32xbf16> to vector<8x8xbf16>
    %81 = vector.extract_strided_slice %11 {offsets = [0, 24], sizes = [8, 8], strides = [1, 1]} : vector<8x32xbf16> to vector<8x8xbf16>
    %82 = vector.extract_strided_slice %13 {offsets = [0, 24], sizes = [8, 8], strides = [1, 1]} : vector<8x32xbf16> to vector<8x8xbf16>
    "tpu.trace_start"() <{level = 10 : i32, message = "le,se->ls"}> : () -> ()
    %cst_26 = arith.constant dense<0.000000e+00> : vector<8x8xf32>
    %83 = tpu.matmul %80, %81, %cst_26 {dimension_numbers = #tpu.dot_dimension_numbers<[1], [1], [0], [0], [0, 0, 1, 0], [], []>} : vector<8x8xbf16>, vector<8x8xbf16>, vector<8x8xf32> -> vector<8x8xf32>
    "tpu.trace_stop"() : () -> ()
    %cst_27 = arith.constant 0.353553385 : f32
    %84 = vector.broadcast %cst_27 : f32 to vector<8x8xf32>
    %85 = arith.mulf %83, %84 : vector<8x8xf32>
    %cst_28 = arith.constant dense<0xFF800000> : vector<8xf32>
    %86 = vector.multi_reduction <maximumf>, %85, %cst_28 [1] : vector<8x8xf32> to vector<8xf32>
    %87 = vector.shape_cast %86 : vector<8xf32> to vector<8x1xf32>
    %88 = vector.broadcast %87 : vector<8x1xf32> to vector<8x8xf32>
    %89 = arith.subf %85, %88 : vector<8x8xf32>
    %90 = math.exp %89 : vector<8x8xf32>
    %cst_29 = arith.constant dense<0.000000e+00> : vector<8xf32>
    %91 = vector.multi_reduction <add>, %90, %cst_29 [1] : vector<8x8xf32> to vector<8xf32>
    %92 = vector.shape_cast %91 : vector<8xf32> to vector<8x1xf32>
    %93 = tpu.reciprocal %92 {approx = true} : vector<8x1xf32> -> vector<8x1xf32>
    %94 = vector.broadcast %93 : vector<8x1xf32> to vector<8x8xf32>
    %95 = arith.mulf %90, %94 : vector<8x8xf32>
    %96 = arith.truncf %95 : vector<8x8xf32> to vector<8x8xbf16>
    %cst_30 = arith.constant dense<0.000000e+00> : vector<8x8xf32>
    %97 = tpu.matmul %96, %82, %cst_30 {dimension_numbers = #tpu.dot_dimension_numbers<[1], [0], [0], [1], [0, 0, 1, 1], [], []>} : vector<8x8xbf16>, vector<8x8xbf16>, vector<8x8xf32> -> vector<8x8xf32>
    %98 = arith.truncf %97 : vector<8x8xf32> to vector<8x8xbf16>
    %99 = vector.extract_strided_slice %14 {offsets = [24, 0], sizes = [8, 32], strides = [1, 1]} : vector<32x32xbf16> to vector<8x32xbf16>
    %cst_31 = arith.constant dense<0.000000e+00> : vector<8x32xf32>
    %100 = tpu.matmul %98, %99, %cst_31 {dimension_numbers = #tpu.dot_dimension_numbers<[1], [0], [0], [1], [0, 0, 1, 1], [], []>} : vector<8x8xbf16>, vector<8x32xbf16>, vector<8x32xf32> -> vector<8x32xf32>
    %101 = arith.addf %79, %100 : vector<8x32xf32>
    %c0_32 = arith.constant 0 : index
    %c0_33 = arith.constant 0 : index
    %102 = vector.load %arg5[%c0_32, %c0_33] : memref<1x32xf32, #tpu.memory_space<vmem>>, vector<1x32xf32>
    %103 = vector.broadcast %102 : vector<1x32xf32> to vector<8x32xf32>
    %104 = arith.addf %101, %103 : vector<8x32xf32>
    %105 = arith.addf %1, %104 : vector<8x32xf32>
    %cst_34 = arith.constant dense<0.000000e+00> : vector<8xf32>
    %106 = vector.multi_reduction <add>, %105, %cst_34 [1] : vector<8x32xf32> to vector<8xf32>
    %107 = vector.shape_cast %106 : vector<8xf32> to vector<8x1xf32>
    %cst_35 = arith.constant 3.200000e+01 : f32
    %108 = vector.broadcast %cst_35 : f32 to vector<8x1xf32>
    %109 = arith.divf %107, %108 : vector<8x1xf32>
    %110 = vector.broadcast %109 : vector<8x1xf32> to vector<8x32xf32>
    %111 = arith.subf %105, %110 : vector<8x32xf32>
    %112 = arith.mulf %111, %111 : vector<8x32xf32>
    %cst_36 = arith.constant dense<0.000000e+00> : vector<8xf32>
    %113 = vector.multi_reduction <add>, %112, %cst_36 [1] : vector<8x32xf32> to vector<8xf32>
    %114 = vector.shape_cast %113 : vector<8xf32> to vector<8x1xf32>
    %cst_37 = arith.constant 3.200000e+01 : f32
    %115 = vector.broadcast %cst_37 : f32 to vector<8x1xf32>
    %116 = arith.divf %114, %115 : vector<8x1xf32>
    %117 = vector.broadcast %109 : vector<8x1xf32> to vector<8x32xf32>
    %118 = arith.subf %105, %117 : vector<8x32xf32>
    %cst_38 = arith.constant 9.99999974E-6 : f32
    %119 = vector.broadcast %cst_38 : f32 to vector<8x1xf32>
    %120 = arith.addf %116, %119 : vector<8x1xf32>
    %121 = math.rsqrt %120 : vector<8x1xf32>
    %122 = vector.broadcast %121 : vector<8x1xf32> to vector<8x32xf32>
    %123 = arith.mulf %118, %122 : vector<8x32xf32>
    %c0_39 = arith.constant 0 : index
    %c0_40 = arith.constant 0 : index
    %124 = vector.load %arg6[%c0_39, %c0_40] : memref<1x32xf32, #tpu.memory_space<vmem>>, vector<1x32xf32>
    %125 = vector.broadcast %124 : vector<1x32xf32> to vector<8x32xf32>
    %126 = arith.mulf %123, %125 : vector<8x32xf32>
    %c0_41 = arith.constant 0 : index
    %c0_42 = arith.constant 0 : index
    %127 = vector.load %arg7[%c0_41, %c0_42] : memref<1x32xf32, #tpu.memory_space<vmem>>, vector<1x32xf32>
    %128 = vector.broadcast %127 : vector<1x32xf32> to vector<8x32xf32>
    %129 = arith.addf %126, %128 : vector<8x32xf32>
    %130 = arith.truncf %129 : vector<8x32xf32> to vector<8x32xbf16>
    %c0_43 = arith.constant 0 : index
    %c0_44 = arith.constant 0 : index
    %131 = vector.load %arg8[%c0_43, %c0_44] : memref<32x128xbf16, #tpu.memory_space<vmem>>, vector<32x128xbf16>
    %cst_45 = arith.constant dense<0.000000e+00> : vector<8x128xf32>
    %132 = tpu.matmul %130, %131, %cst_45 {dimension_numbers = #tpu.dot_dimension_numbers<[1], [0], [0], [1], [0, 0, 1, 1], [], []>} : vector<8x32xbf16>, vector<32x128xbf16>, vector<8x128xf32> -> vector<8x128xf32>
    %c0_46 = arith.constant 0 : index
    %c0_47 = arith.constant 0 : index
    %133 = vector.load %arg9[%c0_46, %c0_47] : memref<1x128xf32, #tpu.memory_space<vmem>>, vector<1x128xf32>
    %134 = vector.broadcast %133 : vector<1x128xf32> to vector<8x128xf32>
    %135 = arith.addf %132, %134 : vector<8x128xf32>
    %cst_48 = arith.constant 0.000000e+00 : f32
    %136 = vector.broadcast %cst_48 : f32 to vector<8x128xf32>
    %137 = arith.maximumf %135, %136 : vector<8x128xf32>
    %138 = arith.truncf %137 : vector<8x128xf32> to vector<8x128xbf16>
    %c0_49 = arith.constant 0 : index
    %c0_50 = arith.constant 0 : index
    %139 = vector.load %arg10[%c0_49, %c0_50] : memref<128x32xbf16, #tpu.memory_space<vmem>>, vector<128x32xbf16>
    %cst_51 = arith.constant dense<0.000000e+00> : vector<8x32xf32>
    %140 = tpu.matmul %138, %139, %cst_51 {dimension_numbers = #tpu.dot_dimension_numbers<[1], [0], [0], [1], [0, 0, 1, 1], [], []>} : vector<8x128xbf16>, vector<128x32xbf16>, vector<8x32xf32> -> vector<8x32xf32>
    %c0_52 = arith.constant 0 : index
    %c0_53 = arith.constant 0 : index
    %141 = vector.load %arg11[%c0_52, %c0_53] : memref<1x32xf32, #tpu.memory_space<vmem>>, vector<1x32xf32>
    %142 = vector.broadcast %141 : vector<1x32xf32> to vector<8x32xf32>
    %143 = arith.addf %140, %142 : vector<8x32xf32>
    %144 = arith.addf %129, %143 : vector<8x32xf32>
    %cst_54 = arith.constant dense<0.000000e+00> : vector<8xf32>
    %145 = vector.multi_reduction <add>, %144, %cst_54 [1] : vector<8x32xf32> to vector<8xf32>
    %146 = vector.shape_cast %145 : vector<8xf32> to vector<8x1xf32>
    %cst_55 = arith.constant 3.200000e+01 : f32
    %147 = vector.broadcast %cst_55 : f32 to vector<8x1xf32>
    %148 = arith.divf %146, %147 : vector<8x1xf32>
    %149 = vector.broadcast %148 : vector<8x1xf32> to vector<8x32xf32>
    %150 = arith.subf %144, %149 : vector<8x32xf32>
    %151 = arith.mulf %150, %150 : vector<8x32xf32>
    %cst_56 = arith.constant dense<0.000000e+00> : vector<8xf32>
    %152 = vector.multi_reduction <add>, %151, %cst_56 [1] : vector<8x32xf32> to vector<8xf32>
    %153 = vector.shape_cast %152 : vector<8xf32> to vector<8x1xf32>
    %cst_57 = arith.constant 3.200000e+01 : f32
    %154 = vector.broadcast %cst_57 : f32 to vector<8x1xf32>
    %155 = arith.divf %153, %154 : vector<8x1xf32>
    %156 = vector.broadcast %148 : vector<8x1xf32> to vector<8x32xf32>
    %157 = arith.subf %144, %156 : vector<8x32xf32>
    %cst_58 = arith.constant 9.99999974E-6 : f32
    %158 = vector.broadcast %cst_58 : f32 to vector<8x1xf32>
    %159 = arith.addf %155, %158 : vector<8x1xf32>
    %160 = math.rsqrt %159 : vector<8x1xf32>
    %161 = vector.broadcast %160 : vector<8x1xf32> to vector<8x32xf32>
    %162 = arith.mulf %157, %161 : vector<8x32xf32>
    %c0_59 = arith.constant 0 : index
    %c0_60 = arith.constant 0 : index
    %163 = vector.load %arg12[%c0_59, %c0_60] : memref<1x32xf32, #tpu.memory_space<vmem>>, vector<1x32xf32>
    %164 = vector.broadcast %163 : vector<1x32xf32> to vector<8x32xf32>
    %165 = arith.mulf %162, %164 : vector<8x32xf32>
    %c0_61 = arith.constant 0 : index
    %c0_62 = arith.constant 0 : index
    %166 = vector.load %arg13[%c0_61, %c0_62] : memref<1x32xf32, #tpu.memory_space<vmem>>, vector<1x32xf32>
    %167 = vector.broadcast %166 : vector<1x32xf32> to vector<8x32xf32>
    %168 = arith.addf %165, %167 : vector<8x32xf32>
    %169 = vector.shape_cast %168 : vector<8x32xf32> to vector<1x8x32xf32>
    %c0_63 = arith.constant 0 : index
    %c0_64 = arith.constant 0 : index
    %c0_65 = arith.constant 0 : index
    %170 = vector.load %arg14[%c0_63, %c0_64, %c0_65] : memref<1x8x32xf32, #tpu.memory_space<vmem>>, vector<1x8x32xf32>
    tpu.vector_store %arg14[%c0_63, %c0_64, %c0_65], %169 {strides = array<i32>} : memref<1x8x32xf32, #tpu.memory_space<vmem>>, vector<1x8x32xf32>,
    return
  }
  func.func @transform_0(%arg0: i32) -> (i32, i32, i32) {
    %c0_i32 = arith.constant 0 : i32
    %c0_i32_0 = arith.constant 0 : i32
    %c0_i32_1 = arith.constant 0 : i32
    return %arg0, %c0_i32, %c0_i32_0 : i32, i32, i32
  }
  func.func @transform_1(%arg0: i32) -> (i32, i32) {
    %c0_i32 = arith.constant 0 : i32
    %c0_i32_0 = arith.constant 0 : i32
    %c0_i32_1 = arith.constant 0 : i32
    return %c0_i32, %c0_i32_0 : i32, i32
  }
  func.func @transform_2(%arg0: i32) -> (i32, i32) {
    %c0_i32 = arith.constant 0 : i32
    %c0_i32_0 = arith.constant 0 : i32
    %c0_i32_1 = arith.constant 0 : i32
    return %c0_i32, %c0_i32_0 : i32, i32
  }
  func.func @transform_3(%arg0: i32) -> (i32, i32) {
    %c0_i32 = arith.constant 0 : i32
    %c0_i32_0 = arith.constant 0 : i32
    %c0_i32_1 = arith.constant 0 : i32
    return %c0_i32, %c0_i32_0 : i32, i32
  }
  func.func @transform_4(%arg0: i32) -> (i32, i32) {
    %c0_i32 = arith.constant 0 : i32
    %c0_i32_0 = arith.constant 0 : i32
    %c0_i32_1 = arith.constant 0 : i32
    return %c0_i32, %c0_i32_0 : i32, i32
  }
  func.func @transform_5(%arg0: i32) -> (i32, i32) {
    %c0_i32 = arith.constant 0 : i32
    %c0_i32_0 = arith.constant 0 : i32
    %c0_i32_1 = arith.constant 0 : i32
    return %c0_i32, %c0_i32_0 : i32, i32
  }
  func.func @transform_6(%arg0: i32) -> (i32, i32) {
    %c0_i32 = arith.constant 0 : i32
    %c0_i32_0 = arith.constant 0 : i32
    %c0_i32_1 = arith.constant 0 : i32
    return %c0_i32, %c0_i32_0 : i32, i32
  }
  func.func @transform_7(%arg0: i32) -> (i32, i32) {
    %c0_i32 = arith.constant 0 : i32
    %c0_i32_0 = arith.constant 0 : i32
    %c0_i32_1 = arith.constant 0 : i32
    return %c0_i32, %c0_i32_0 : i32, i32
  }
  func.func @transform_8(%arg0: i32) -> (i32, i32) {
    %c0_i32 = arith.constant 0 : i32
    %c0_i32_0 = arith.constant 0 : i32
    %c0_i32_1 = arith.constant 0 : i32
    return %c0_i32, %c0_i32_0 : i32, i32
  }
  func.func @transform_9(%arg0: i32) -> (i32, i32) {
    %c0_i32 = arith.constant 0 : i32
    %c0_i32_0 = arith.constant 0 : i32
    %c0_i32_1 = arith.constant 0 : i32
    return %c0_i32, %c0_i32_0 : i32, i32
  }
  func.func @transform_10(%arg0: i32) -> (i32, i32) {
    %c0_i32 = arith.constant 0 : i32
    %c0_i32_0 = arith.constant 0 : i32
    %c0_i32_1 = arith.constant 0 : i32
    return %c0_i32, %c0_i32_0 : i32, i32
  }
  func.func @transform_11(%arg0: i32) -> (i32, i32) {
    %c0_i32 = arith.constant 0 : i32
    %c0_i32_0 = arith.constant 0 : i32
    %c0_i32_1 = arith.constant 0 : i32
    return %c0_i32, %c0_i32_0 : i32, i32
  }
  func.func @transform_12(%arg0: i32) -> (i32, i32) {
    %c0_i32 = arith.constant 0 : i32
    %c0_i32_0 = arith.constant 0 : i32
    %c0_i32_1 = arith.constant 0 : i32
    return %c0_i32, %c0_i32_0 : i32, i32
  }
  func.func @transform_13(%arg0: i32) -> (i32, i32, i32) {
    %c0_i32 = arith.constant 0 : i32
    %c0_i32_0 = arith.constant 0 : i32
    %c0_i32_1 = arith.constant 0 : i32
    return %arg0, %c0_i32, %c0_i32_0 : i32, i32, i32
  }
}

</mosaic_0001>

<llo_original>
// kernel: tpu_custom_call.1
$region0: #{tpu_custom_call.1}
  #allocation0 [shape = 'u32[]', space=smem, size = 0x4, offset = 0x4, fixed_abs, tag = 'smem constant byte address 0x4 - core index']
  #allocation1 [shape = 'u32[144,128]{1,0:T(1,128)}', space=vmem, size = 0x12000, scoped, tag = 'internal scratch']
  %s0 = inlined_call_operand.hbm [shape: f32[2,8,32], index: 0, kind: input, shape index: {}]
  %s1 = inlined_call_operand.hbm [shape: bf16[32,96], index: 1, kind: input, shape index: {}]
  %s2 = inlined_call_operand.hbm [shape: f32[1,96], index: 2, kind: input, shape index: {}]
  %s3 = inlined_call_operand.hbm [shape: bf16[32,32], index: 3, kind: input, shape index: {}]
  %s4 = inlined_call_operand.hbm [shape: f32[1,32], index: 4, kind: input, shape index: {}]
  %s5 = inlined_call_operand.hbm [shape: f32[1,32], index: 5, kind: input, shape index: {}]
  %s6 = inlined_call_operand.hbm [shape: f32[1,32], index: 6, kind: input, shape index: {}]
  %s7 = inlined_call_operand.hbm [shape: bf16[32,128], index: 7, kind: input, shape index: {}]
  %s8 = inlined_call_operand.hbm [shape: f32[1,128], index: 8, kind: input, shape index: {}]
  %s9 = inlined_call_operand.hbm [shape: bf16[128,32], index: 9, kind: input, shape index: {}]
  %s10 = inlined_call_operand.hbm [shape: f32[1,32], index: 10, kind: input, shape index: {}]
  %s11 = inlined_call_operand.hbm [shape: f32[1,32], index: 11, kind: input, shape index: {}]
  %s12 = inlined_call_operand.hbm [shape: f32[1,32], index: 12, kind: input, shape index: {}]
  %s13 = inlined_call_operand.hbm [shape: f32[2,8,32], index: 13, kind: output, shape index: {}]
  %s14 = sld [smem:[#allocation0]]
  $region137: #{tpu_custom_call.1} parent=0
    _
  %s16 = ssub.s32 1, %s14
  %s17 = scalar_select 0, %s16, %s14
  $region1: #{tpu_custom_call.1} parent=0
    #allocation2 [shape = 'u8[8192]{0}', space=vmem, size = 0x2000, scoped, tag = 'input window, operand 0']
    #allocation3 [shape = 's32[2]{0}', space=sflag, size = 0x8, scoped, tag = 'scoped memory for tpu_custom_call.1']
    #allocation4 [shape = 's32[2]{0}', space=sflag, size = 0x8, scoped, tag = 'scoped memory for tpu_custom_call.1']
    #allocation5 [shape = 'u8[8192]{0}', space=vmem, size = 0x2000, scoped, tag = 'input window, operand 1, single buffered']
    #allocation6 [shape = 's32[1]{0}', space=sflag, size = 0x4, scoped, tag = 'scoped memory for tpu_custom_call.1']
    #allocation7 [shape = 'u8[512]{0}', space=vmem, size = 0x400, scoped, tag = 'input window, operand 2, single buffered']
    #allocation8 [shape = 'u8[8192]{0}', space=vmem, size = 0x2000, scoped, tag = 'input window, operand 3, single buffered']
    #allocation9 [shape = 's32[1]{0}', space=sflag, size = 0x4, scoped, tag = 'scoped memory for tpu_custom_call.1']
    #allocation10 [shape = 'u8[512]{0}', space=vmem, size = 0x400, scoped, tag = 'input window, operand 4, single buffered']
    #allocation11 [shape = 'u8[512]{0}', space=vmem, size = 0x400, scoped, tag = 'input window, operand 5, single buffered']
    #allocation12 [shape = 's32[1]{0}', space=sflag, size = 0x4, scoped, tag = 'scoped memory for tpu_custom_call.1']
    #allocation13 [shape = 'u8[512]{0}', space=vmem, size = 0x400, scoped, tag = 'input window, operand 6, single buffered']
    #allocation14 [shape = 'u8[8192]{0}', space=vmem, size = 0x2000, scoped, tag = 'input window, operand 7, single buffered']
    #allocation15 [shape = 's32[1]{0}', space=sflag, size = 0x4, scoped, tag = 'scoped memory for tpu_custom_call.1']
    #allocation16 [shape = 'u8[512]{0}', space=vmem, size = 0x400, scoped, tag = 'input window, operand 8, single buffered']
    #allocation17 [shape = 'u8[32768]{0}', space=vmem, size = 0x8000, scoped, tag = 'input window, operand 9, single buffered']
    #allocation18 [shape = 's32[1]{0}', space=sflag, size = 0x4, scoped, tag = 'scoped memory for tpu_custom_call.1']
    #allocation19 [shape = 'u8[512]{0}', space=vmem, size = 0x400, scoped, tag = 'input window, operand 10, single buffered']
    #allocation20 [shape = 'u8[512]{0}', space=vmem, size = 0x400, scoped, tag = 'input window, operand 11, single buffered']
    #allocation21 [shape = 's32[1]{0}', space=sflag, size = 0x4, scoped, tag = 'scoped memory for tpu_custom_call.1']
    #allocation22 [shape = 'u8[512]{0}', space=vmem, size = 0x400, scoped, tag = 'input window, operand 12, single buffered']
    #allocation23 [shape = 'u8[8192]{0}', space=vmem, size = 0x2000, scoped, tag = 'output window, operand 0']
    %18 = vsyncpa [#allocation3], 0
    %s19 = scalar_lea.sflag [#allocation3], 1
    %20 = vsyncpa %s19, 0
    %21 = vsyncpa [#allocation6], 0
    %22 = vsyncpa [#allocation9], 0
    %23 = vsyncpa [#allocation12], 0
    %24 = vsyncpa [#allocation15], 0
    %25 = vsyncpa [#allocation18], 0
    %26 = vsyncpa [#allocation21], 0
    %27 = vsyncpa [#allocation4], 0
    %s28 = scalar_lea.sflag [#allocation4], 1
    %29 = vsyncpa %s28, 0
    loop: start=0, step=1, limit=4
    $region2: #{tpu_custom_call.1} parent=1 // loop_pre_header
      _
    $region3: #{tpu_custom_call.1} parent=1 // loop_header
      %s31 = sphi 0, %s35
      %p32 = scmp.ge.s32.totalorder %s31, 4
      %s41 = sphi 0, %s43
      %s44 = sphi 0, %s41
      %s45 = sphi 0, %s44
      %s61 = sphi 0, %s45
      %s65 = sphi 0, %s65
      %s67 = sphi 0, %s65
      %s68 = sphi 0, %s67
      %s82 = sphi 0, %s68
      %s86 = sphi 0, %s86
      %s88 = sphi 0, %s86
      %s89 = sphi 0, %s88
      %s103 = sphi 0, %s89
      %s107 = sphi 0, %s107
      %s109 = sphi 0, %s107
      %s110 = sphi 0, %s109
      %s124 = sphi 0, %s110
      %s128 = sphi 0, %s128
      %s130 = sphi 0, %s128
      %s131 = sphi 0, %s130
      %s145 = sphi 0, %s131
      %s149 = sphi 0, %s149
      %s151 = sphi 0, %s149
      %s152 = sphi 0, %s151
      %s166 = sphi 0, %s152
      %s170 = sphi 0, %s170
      %s172 = sphi 0, %s170
      %s173 = sphi 0, %s172
      %s187 = sphi 0, %s173
      %s191 = sphi 0, %s191
      %s193 = sphi 0, %s191
      %s194 = sphi 0, %s193
      %s208 = sphi 0, %s194
      %s212 = sphi 0, %s212
      %s214 = sphi 0, %s212
      %s215 = sphi 0, %s214
      %s229 = sphi 0, %s215
      %s233 = sphi 0, %s233
      %s235 = sphi 0, %s233
      %s236 = sphi 0, %s235
      %s250 = sphi 0, %s236
      %s254 = sphi 0, %s254
      %s256 = sphi 0, %s254
      %s257 = sphi 0, %s256
      %s271 = sphi 0, %s257
      %s275 = sphi 0, %s275
      %s277 = sphi 0, %s275
      %s278 = sphi 0, %s277
      %s292 = sphi 0, %s278
      %s296 = sphi 0, %s296
      %s298 = sphi 0, %s296
      %s299 = sphi 0, %s298
      %s313 = sphi 0, %s299
      %s319 = sphi 0, %s321
      %s322 = sphi 0, %s319
      %s323 = sphi 0, %s322
      %s339 = sphi 0, %s323
    $region4: #{tpu_custom_call.1} parent=1 // loop_header_branch
      %34 = sbr.rel (%p32) target = $region8
    $region5: #{tpu_custom_call.1} parent=1 // loop_body
      %s36 = ssub.s32 %s31, 1
      %s37 = ssub.s32 %s31, 2
      %s38 = sadd.s32 %s31, 1
      %s39 = ssub.s32 %s31, %s38
      %p40 = scmp.eq.s32.totalorder %s39, 0
      %s42 = sadd.s32 %s41, 1
      %s43 = scalar_select %p40, %s41, %s42
      %p46 = pneg %p40
      %p47 = scmp.eq.s32.totalorder %s31, 1
      %p48 = por %p46, %p47
      %p49 = scmp.ne.s32.totalorder %s41, %s44
      %p50 = scmp.eq.s32.totalorder %s31, 0
      %p51 = por %p49, %p50
      %p52 = scmp.ne.s32.totalorder %s41, %s44
      %p53 = scmp.eq.s32.totalorder %s36, 1
      %p54 = por %p52, %p53
      %p55 = scmp.ne.s32.totalorder %s44, %s45
      %p56 = scmp.eq.s32.totalorder %s36, 0
      %p57 = por %p55, %p56
      %p58 = scmp.ne.s32.totalorder %s44, %s45
      %p59 = scmp.eq.s32.totalorder %s37, 1
      %p60 = por %p58, %p59
      %p62 = scmp.ne.s32.totalorder %s45, %s61
      %p63 = scmp.eq.s32.totalorder %s37, 0
      %p64 = por %p62, %p63
      %s66 = sadd.s32 %s65, 1
      %p69 = scmp.eq.s32.totalorder %s31, 1
      %p70 = scmp.ne.s32.totalorder %s65, %s67
      %p71 = scmp.eq.s32.totalorder %s31, 0
      %p72 = por %p70, %p71
      %p73 = scmp.ne.s32.totalorder %s65, %s67
      %p74 = scmp.eq.s32.totalorder %s36, 1
      %p75 = por %p73, %p74
      %p76 = scmp.ne.s32.totalorder %s67, %s68
      %p77 = scmp.eq.s32.totalorder %s36, 0
      %p78 = por %p76, %p77
      %p79 = scmp.ne.s32.totalorder %s67, %s68
      %p80 = scmp.eq.s32.totalorder %s37, 1
      %p81 = por %p79, %p80
      %p83 = scmp.ne.s32.totalorder %s68, %s82
      %p84 = scmp.eq.s32.totalorder %s37, 0
      %p85 = por %p83, %p84
      %s87 = sadd.s32 %s86, 1
      %p90 = scmp.eq.s32.totalorder %s31, 1
      %p91 = scmp.ne.s32.totalorder %s86, %s88
      %p92 = scmp.eq.s32.totalorder %s31, 0
      %p93 = por %p91, %p92
      %p94 = scmp.ne.s32.totalorder %s86, %s88
      %p95 = scmp.eq.s32.totalorder %s36, 1
      %p96 = por %p94, %p95
      %p97 = scmp.ne.s32.totalorder %s88, %s89
      %p98 = scmp.eq.s32.totalorder %s36, 0
      %p99 = por %p97, %p98
      %p100 = scmp.ne.s32.totalorder %s88, %s89
      %p101 = scmp.eq.s32.totalorder %s37, 1
      %p102 = por %p100, %p101
      %p104 = scmp.ne.s32.totalorder %s89, %s103
      %p105 = scmp.eq.s32.totalorder %s37, 0
      %p106 = por %p104, %p105
      %s108 = sadd.s32 %s107, 1
      %p111 = scmp.eq.s32.totalorder %s31, 1
      %p112 = scmp.ne.s32.totalorder %s107, %s109
      %p113 = scmp.eq.s32.totalorder %s31, 0
      %p114 = por %p112, %p113
      %p115 = scmp.ne.s32.totalorder %s107, %s109
      %p116 = scmp.eq.s32.totalorder %s36, 1
      %p117 = por %p115, %p116
      %p118 = scmp.ne.s32.totalorder %s109, %s110
      %p119 = scmp.eq.s32.totalorder %s36, 0
      %p120 = por %p118, %p119
      %p121 = scmp.ne.s32.totalorder %s109, %s110
      %p122 = scmp.eq.s32.totalorder %s37, 1
      %p123 = por %p121, %p122
      %p125 = scmp.ne.s32.totalorder %s110, %s124
      %p126 = scmp.eq.s32.totalorder %s37, 0
      %p127 = por %p125, %p126
      %s129 = sadd.s32 %s128, 1
      %p132 = scmp.eq.s32.totalorder %s31, 1
      %p133 = scmp.ne.s32.totalorder %s128, %s130
      %p134 = scmp.eq.s32.totalorder %s31, 0
      %p135 = por %p133, %p134
      %p136 = scmp.ne.s32.totalorder %s128, %s130
      %p137 = scmp.eq.s32.totalorder %s36, 1
      %p138 = por %p136, %p137
      %p139 = scmp.ne.s32.totalorder %s130, %s131
      %p140 = scmp.eq.s32.totalorder %s36, 0
      %p141 = por %p139, %p140
      %p142 = scmp.ne.s32.totalorder %s130, %s131
      %p143 = scmp.eq.s32.totalorder %s37, 1
      %p144 = por %p142, %p143
      %p146 = scmp.ne.s32.totalorder %s131, %s145
      %p147 = scmp.eq.s32.totalorder %s37, 0
      %p148 = por %p146, %p147
      %s150 = sadd.s32 %s149, 1
      %p153 = scmp.eq.s32.totalorder %s31, 1
      %p154 = scmp.ne.s32.totalorder %s149, %s151
      %p155 = scmp.eq.s32.totalorder %s31, 0
      %p156 = por %p154, %p155
      %p157 = scmp.ne.s32.totalorder %s149, %s151
      %p158 = scmp.eq.s32.totalorder %s36, 1
      %p159 = por %p157, %p158
      %p160 = scmp.ne.s32.totalorder %s151, %s152
      %p161 = scmp.eq.s32.totalorder %s36, 0
      %p162 = por %p160, %p161
      %p163 = scmp.ne.s32.totalorder %s151, %s152
      %p164 = scmp.eq.s32.totalorder %s37, 1
      %p165 = por %p163, %p164
      %p167 = scmp.ne.s32.totalorder %s152, %s166
      %p168 = scmp.eq.s32.totalorder %s37, 0
      %p169 = por %p167, %p168
      %s171 = sadd.s32 %s170, 1
      %p174 = scmp.eq.s32.totalorder %s31, 1
      %p175 = scmp.ne.s32.totalorder %s170, %s172
      %p176 = scmp.eq.s32.totalorder %s31, 0
      %p177 = por %p175, %p176
      %p178 = scmp.ne.s32.totalorder %s170, %s172
      %p179 = scmp.eq.s32.totalorder %s36, 1
      %p180 = por %p178, %p179
      %p181 = scmp.ne.s32.totalorder %s172, %s173
      %p182 = scmp.eq.s32.totalorder %s36, 0
      %p183 = por %p181, %p182
      %p184 = scmp.ne.s32.totalorder %s172, %s173
      %p185 = scmp.eq.s32.totalorder %s37, 1
      %p186 = por %p184, %p185
      %p188 = scmp.ne.s32.totalorder %s173, %s187
      %p189 = scmp.eq.s32.totalorder %s37, 0
      %p190 = por %p188, %p189
      %s192 = sadd.s32 %s191, 1
      %p195 = scmp.eq.s32.totalorder %s31, 1
      %p196 = scmp.ne.s32.totalorder %s191, %s193
      %p197 = scmp.eq.s32.totalorder %s31, 0
      %p198 = por %p196, %p197
      %p199 = scmp.ne.s32.totalorder %s191, %s193
      %p200 = scmp.eq.s32.totalorder %s36, 1
      %p201 = por %p199, %p200
      %p202 = scmp.ne.s32.totalorder %s193, %s194
      %p203 = scmp.eq.s32.totalorder %s36, 0
      %p204 = por %p202, %p203
      %p205 = scmp.ne.s32.totalorder %s193, %s194
      %p206 = scmp.eq.s32.totalorder %s37, 1
      %p207 = por %p205, %p206
      %p209 = scmp.ne.s32.totalorder %s194, %s208
      %p210 = scmp.eq.s32.totalorder %s37, 0
      %p211 = por %p209, %p210
      %s213 = sadd.s32 %s212, 1
      %p216 = scmp.eq.s32.totalorder %s31, 1
      %p217 = scmp.ne.s32.totalorder %s212, %s214
      %p218 = scmp.eq.s32.totalorder %s31, 0
      %p219 = por %p217, %p218
      %p220 = scmp.ne.s32.totalorder %s212, %s214
      %p221 = scmp.eq.s32.totalorder %s36, 1
      %p222 = por %p220, %p221
      %p223 = scmp.ne.s32.totalorder %s214, %s215
      %p224 = scmp.eq.s32.totalorder %s36, 0
      %p225 = por %p223, %p224
      %p226 = scmp.ne.s32.totalorder %s214, %s215
      %p227 = scmp.eq.s32.totalorder %s37, 1
      %p228 = por %p226, %p227
      %p230 = scmp.ne.s32.totalorder %s215, %s229
      %p231 = scmp.eq.s32.totalorder %s37, 0
      %p232 = por %p230, %p231
      %s234 = sadd.s32 %s233, 1
      %p237 = scmp.eq.s32.totalorder %s31, 1
      %p238 = scmp.ne.s32.totalorder %s233, %s235
      %p239 = scmp.eq.s32.totalorder %s31, 0
      %p240 = por %p238, %p239
      %p241 = scmp.ne.s32.totalorder %s233, %s235
      %p242 = scmp.eq.s32.totalorder %s36, 1
      %p243 = por %p241, %p242
      %p244 = scmp.ne.s32.totalorder %s235, %s236
      %p245 = scmp.eq.s32.totalorder %s36, 0
      %p246 = por %p244, %p245
      %p247 = scmp.ne.s32.totalorder %s235, %s236
      %p248 = scmp.eq.s32.totalorder %s37, 1
      %p249 = por %p247, %p248
      %p251 = scmp.ne.s32.totalorder %s236, %s250
      %p252 = scmp.eq.s32.totalorder %s37, 0
      %p253 = por %p251, %p252
      %s255 = sadd.s32 %s254, 1
      %p258 = scmp.eq.s32.totalorder %s31, 1
      %p259 = scmp.ne.s32.totalorder %s254, %s256
      %p260 = scmp.eq.s32.totalorder %s31, 0
      %p261 = por %p259, %p260
      %p262 = scmp.ne.s32.totalorder %s254, %s256
      %p263 = scmp.eq.s32.totalorder %s36, 1
      %p264 = por %p262, %p263
      %p265 = scmp.ne.s32.totalorder %s256, %s257
      %p266 = scmp.eq.s32.totalorder %s36, 0
      %p267 = por %p265, %p266
      %p268 = scmp.ne.s32.totalorder %s256, %s257
      %p269 = scmp.eq.s32.totalorder %s37, 1
      %p270 = por %p268, %p269
      %p272 = scmp.ne.s32.totalorder %s257, %s271
      %p273 = scmp.eq.s32.totalorder %s37, 0
      %p274 = por %p272, %p273
      %s276 = sadd.s32 %s275, 1
      %p279 = scmp.eq.s32.totalorder %s31, 1
      %p280 = scmp.ne.s32.totalorder %s275, %s277
      %p281 = scmp.eq.s32.totalorder %s31, 0
      %p282 = por %p280, %p281
      %p283 = scmp.ne.s32.totalorder %s275, %s277
      %p284 = scmp.eq.s32.totalorder %s36, 1
      %p285 = por %p283, %p284
      %p286 = scmp.ne.s32.totalorder %s277, %s278
      %p287 = scmp.eq.s32.totalorder %s36, 0
      %p288 = por %p286, %p287
      %p289 = scmp.ne.s32.totalorder %s277, %s278
      %p290 = scmp.eq.s32.totalorder %s37, 1
      %p291 = por %p289, %p290
      %p293 = scmp.ne.s32.totalorder %s278, %s292
      %p294 = scmp.eq.s32.totalorder %s37, 0
      %p295 = por %p293, %p294
      %s297 = sadd.s32 %s296, 1
      %p300 = scmp.eq.s32.totalorder %s31, 1
      %p301 = scmp.ne.s32.totalorder %s296, %s298
      %p302 = scmp.eq.s32.totalorder %s31, 0
      %p303 = por %p301, %p302
      %p304 = scmp.ne.s32.totalorder %s296, %s298
      %p305 = scmp.eq.s32.totalorder %s36, 1
      %p306 = por %p304, %p305
      %p307 = scmp.ne.s32.totalorder %s298, %s299
      %p308 = scmp.eq.s32.totalorder %s36, 0
      %p309 = por %p307, %p308
      %p310 = scmp.ne.s32.totalorder %s298, %s299
      %p311 = scmp.eq.s32.totalorder %s37, 1
      %p312 = por %p310, %p311
      %p314 = scmp.ne.s32.totalorder %s299, %s313
      %p315 = scmp.eq.s32.totalorder %s37, 0
      %p316 = por %p314, %p315
      %s317 = ssub.s32 %s31, %s38
      %p318 = scmp.eq.s32.totalorder %s317, 0
      %s320 = sadd.s32 %s319, 1
      %s321 = scalar_select %p318, %s319, %s320
      %p324 = pneg %p318
      %p325 = scmp.eq.s32.totalorder %s31, 1
      %p326 = por %p324, %p325
      %p327 = scmp.ne.s32.totalorder %s319, %s322
      %p328 = scmp.eq.s32.totalorder %s31, 0
      %p329 = por %p327, %p328
      %p330 = scmp.ne.s32.totalorder %s319, %s322
      %p331 = scmp.eq.s32.totalorder %s36, 1
      %p332 = por %p330, %p331
      %p333 = scmp.ne.s32.totalorder %s322, %s323
      %p334 = scmp.eq.s32.totalorder %s36, 0
      %p335 = por %p333, %p334
      %p336 = scmp.ne.s32.totalorder %s322, %s323
      %p337 = scmp.eq.s32.totalorder %s37, 1
      %p338 = por %p336, %p337
      %p340 = scmp.ne.s32.totalorder %s323, %s339
      %p341 = scmp.eq.s32.totalorder %s37, 0
      %p342 = por %p340, %p341
      %p343 = scmp.le.s32.totalorder 1, %s31
      %p344 = scmp.lt.s32.totalorder %s31, 3
      %p345 = pnand %p343, %p344
      %p346 = pneg %p345
      // Predicated region
      $region9: #{tpu_custom_call.1} parent=5 // pred_check
        _
      $region10: #{tpu_custom_call.1} parent=5 // pred_check_branch
        %348 = sbr.rel (%p345) target = $region12
      $region11: #{tpu_custom_call.1} parent=5 // pred_region
        %s349 = ssub.s32 %s31, 1
        // Predicated region
        $region13: #{tpu_custom_call.1} parent=11 // pred_check
          %p350 = pneg %p78
        $region14: #{tpu_custom_call.1} parent=11 // pred_check_branch
          %352 = sbr.rel (%p350) target = $region16
        $region15: #{tpu_custom_call.1} parent=11 // pred_region
          %s354 = ssub.s32 256, 256
          %355 = vsyncadd [#allocation6], %s354
          %s356 = sshll.u32 [#allocation5], 4
          %s357 = int_to_ptr.vmem [resolvable:$true] %s356
          %362 = dma.hbm_to_vmem [thread:$0]  %s1, 256, %s357, [#allocation6], 64, 64, 4
        $region16: #{tpu_custom_call.1} parent=11 // pred_fallthru
          _
        // Predicated region
        $region17: #{tpu_custom_call.1} parent=11 // pred_check
          %p363 = pneg %p99
        $region18: #{tpu_custom_call.1} parent=11 // pred_check_branch
          %365 = sbr.rel (%p363) target = $region20
        $region19: #{tpu_custom_call.1} parent=11 // pred_region
          %s367 = ssub.s32 16, 16
          %368 = vsyncadd [#allocation6], %s367
          %s370 = sshll.u32 [#allocation7], 4
          %s371 = int_to_ptr.vmem [resolvable:$true] %s370
          %373 = dma.hbm_to_vmem [thread:$0]  %s2, 16, %s371, [#allocation6]
        $region20: #{tpu_custom_call.1} parent=11 // pred_fallthru
          _
        // Predicated region
        $region21: #{tpu_custom_call.1} parent=11 // pred_check
          %p374 = pneg %p120
        $region22: #{tpu_custom_call.1} parent=11 // pred_check_branch
          %376 = sbr.rel (%p374) target = $region24
        $region23: #{tpu_custom_call.1} parent=11 // pred_region
          %s378 = ssub.s32 256, 256
          %379 = vsyncadd [#allocation9], %s378
          %s380 = sshll.u32 [#allocation8], 4
          %s381 = int_to_ptr.vmem [resolvable:$true] %s380
          %386 = dma.hbm_to_vmem [thread:$0]  %s3, 256, %s381, [#allocation9], 64, 64, 4
        $region24: #{tpu_custom_call.1} parent=11 // pred_fallthru
          _
        // Predicated region
        $region25: #{tpu_custom_call.1} parent=11 // pred_check
          %p387 = pneg %p141
        $region26: #{tpu_custom_call.1} parent=11 // pred_check_branch
          %389 = sbr.rel (%p387) target = $region28
        $region27: #{tpu_custom_call.1} parent=11 // pred_region
          %s391 = ssub.s32 16, 16
          %392 = vsyncadd [#allocation9], %s391
          %s394 = sshll.u32 [#allocation10], 4
          %s395 = int_to_ptr.vmem [resolvable:$true] %s394
          %397 = dma.hbm_to_vmem [thread:$0]  %s4, 16, %s395, [#allocation9]
        $region28: #{tpu_custom_call.1} parent=11 // pred_fallthru
          _
        // Predicated region
        $region29: #{tpu_custom_call.1} parent=11 // pred_check
          %p398 = pneg %p162
        $region30: #{tpu_custom_call.1} parent=11 // pred_check_branch
          %400 = sbr.rel (%p398) target = $region32
        $region31: #{tpu_custom_call.1} parent=11 // pred_region
          %s402 = ssub.s32 16, 16
          %403 = vsyncadd [#allocation12], %s402
          %s405 = sshll.u32 [#allocation11], 4
          %s406 = int_to_ptr.vmem [resolvable:$true] %s405
          %408 = dma.hbm_to_vmem [thread:$0]  %s5, 16, %s406, [#allocation12]
        $region32: #{tpu_custom_call.1} parent=11 // pred_fallthru
          _
        // Predicated region
        $region33: #{tpu_custom_call.1} parent=11 // pred_check
          %p409 = pneg %p183
        $region34: #{tpu_custom_call.1} parent=11 // pred_check_branch
          %411 = sbr.rel (%p409) target = $region36
        $region35: #{tpu_custom_call.1} parent=11 // pred_region
          %s413 = ssub.s32 16, 16
          %414 = vsyncadd [#allocation12], %s413
          %s416 = sshll.u32 [#allocation13], 4
          %s417 = int_to_ptr.vmem [resolvable:$true] %s416
          %419 = dma.hbm_to_vmem [thread:$0]  %s6, 16, %s417, [#allocation12]
        $region36: #{tpu_custom_call.1} parent=11 // pred_fallthru
          _
        // Predicated region
        $region37: #{tpu_custom_call.1} parent=11 // pred_check
          %p420 = pneg %p204
        $region38: #{tpu_custom_call.1} parent=11 // pred_check_branch
          %422 = sbr.rel (%p420) target = $region40
        $region39: #{tpu_custom_call.1} parent=11 // pred_region
          %s424 = ssub.s32 256, 256
          %425 = vsyncadd [#allocation15], %s424
          %s426 = sshll.u32 [#allocation14], 4
          %s427 = int_to_ptr.vmem [resolvable:$true] %s426
          %432 = dma.hbm_to_vmem [thread:$0]  %s7, 256, %s427, [#allocation15], 64, 64, 4
        $region40: #{tpu_custom_call.1} parent=11 // pred_fallthru
          _
        // Predicated region
        $region41: #{tpu_custom_call.1} parent=11 // pred_check
          %p433 = pneg %p225
        $region42: #{tpu_custom_call.1} parent=11 // pred_check_branch
          %435 = sbr.rel (%p433) target = $region44
        $region43: #{tpu_custom_call.1} parent=11 // pred_region
          %s437 = ssub.s32 16, 16
          %438 = vsyncadd [#allocation15], %s437
          %s440 = sshll.u32 [#allocation16], 4
          %s441 = int_to_ptr.vmem [resolvable:$true] %s440
          %443 = dma.hbm_to_vmem [thread:$0]  %s8, 16, %s441, [#allocation15]
        $region44: #{tpu_custom_call.1} parent=11 // pred_fallthru
          _
        // Predicated region
        $region45: #{tpu_custom_call.1} parent=11 // pred_check
          %p444 = pneg %p246
        $region46: #{tpu_custom_call.1} parent=11 // pred_check_branch
          %446 = sbr.rel (%p444) target = $region48
        $region47: #{tpu_custom_call.1} parent=11 // pred_region
          %s448 = ssub.s32 1024, 1024
          %449 = vsyncadd [#allocation18], %s448
          %s450 = sshll.u32 [#allocation17], 4
          %s451 = int_to_ptr.vmem [resolvable:$true] %s450
          %456 = dma.hbm_to_vmem [thread:$0]  %s9, 1024, %s451, [#allocation18], 64, 64, 4
        $region48: #{tpu_custom_call.1} parent=11 // pred_fallthru
          _
        // Predicated region
        $region49: #{tpu_custom_call.1} parent=11 // pred_check
          %p457 = pneg %p267
        $region50: #{tpu_custom_call.1} parent=11 // pred_check_branch
          %459 = sbr.rel (%p457) target = $region52
        $region51: #{tpu_custom_call.1} parent=11 // pred_region
          %s461 = ssub.s32 16, 16
          %462 = vsyncadd [#allocation18], %s461
          %s464 = sshll.u32 [#allocation19], 4
          %s465 = int_to_ptr.vmem [resolvable:$true] %s464
          %467 = dma.hbm_to_vmem [thread:$0]  %s10, 16, %s465, [#allocation18]
        $region52: #{tpu_custom_call.1} parent=11 // pred_fallthru
          _
        // Predicated region
        $region53: #{tpu_custom_call.1} parent=11 // pred_check
          %p468 = pneg %p288
        $region54: #{tpu_custom_call.1} parent=11 // pred_check_branch
          %470 = sbr.rel (%p468) target = $region56
        $region55: #{tpu_custom_call.1} parent=11 // pred_region
          %s472 = ssub.s32 16, 16
          %473 = vsyncadd [#allocation21], %s472
          %s475 = sshll.u32 [#allocation20], 4
          %s476 = int_to_ptr.vmem [resolvable:$true] %s475
          %478 = dma.hbm_to_vmem [thread:$0]  %s11, 16, %s476, [#allocation21]
        $region56: #{tpu_custom_call.1} parent=11 // pred_fallthru
          _
        // Predicated region
        $region57: #{tpu_custom_call.1} parent=11 // pred_check
          %p479 = pneg %p309
        $region58: #{tpu_custom_call.1} parent=11 // pred_check_branch
          %481 = sbr.rel (%p479) target = $region60
        $region59: #{tpu_custom_call.1} parent=11 // pred_region
          %s483 = ssub.s32 16, 16
          %484 = vsyncadd [#allocation21], %s483
          %s486 = sshll.u32 [#allocation22], 4
          %s487 = int_to_ptr.vmem [resolvable:$true] %s486
          %489 = dma.hbm_to_vmem [thread:$0]  %s12, 16, %s487, [#allocation21]
        $region60: #{tpu_custom_call.1} parent=11 // pred_fallthru
          _
      $region12: #{tpu_custom_call.1} parent=5 // pred_fallthru
        _
      %p490 = scmp.lt.s32.totalorder %s31, 2
      // Predicated region
      $region61: #{tpu_custom_call.1} parent=5 // pred_check
        %p491 = pneg %p490
      $region62: #{tpu_custom_call.1} parent=5 // pred_check_branch
        %493 = sbr.rel (%p491) target = $region64
      $region63: #{tpu_custom_call.1} parent=5 // pred_region
        // Predicated region
        $region65: #{tpu_custom_call.1} parent=63 // pred_check
          %p494 = pneg %p51
        $region66: #{tpu_custom_call.1} parent=63 // pred_check_branch
          %496 = sbr.rel (%p494) target = $region68
        $region67: #{tpu_custom_call.1} parent=63 // pred_region
          %s497 = sand.u32 %s41, 1
          %s498 = scalar_lea.sflag [#allocation3], %s497
          %s499 = sand.u32 %s41, 1
          %s500 = smul.addr %s499, 8
          %s501 = scalar_lea.vmem [#allocation2], %s500
          %s503 = ssub.s32 128, 128
          %504 = vsyncadd %s498, %s503
          %s505 = smul.addr %s31, 128
          %s506 = scalar_lea.hbm %s0, %s505
          %s508 = sshll.u32 %s501, 4
          %s509 = int_to_ptr.vmem [resolvable:$true] %s508
          %511 = dma.hbm_to_vmem [thread:$0]  %s506, 128, %s509, %s498
        $region68: #{tpu_custom_call.1} parent=63 // pred_fallthru
          _
      $region64: #{tpu_custom_call.1} parent=5 // pred_fallthru
        _
      %p512 = scmp.le.s32.totalorder 1, %s31
      %p513 = scmp.lt.s32.totalorder %s31, 3
      %p514 = pnand %p512, %p513
      %p515 = pneg %p514
      // Predicated region
      $region69: #{tpu_custom_call.1} parent=5 // pred_check
        _
      $region70: #{tpu_custom_call.1} parent=5 // pred_check_branch
        %517 = sbr.rel (%p514) target = $region72
      $region71: #{tpu_custom_call.1} parent=5 // pred_region
        %s518 = ssub.s32 %s31, 1
        %s519 = sand.u32 %s44, 1
        %s520 = scalar_lea.sflag [#allocation3], %s519
        %s521 = sand.u32 %s44, 1
        %s522 = smul.addr %s521, 8
        %s523 = scalar_lea.vmem [#allocation2], %s522
        // Predicated region
        $region73: #{tpu_custom_call.1} parent=71 // pred_check
          %p524 = pneg %p57
        $region74: #{tpu_custom_call.1} parent=71 // pred_check_branch
          %526 = sbr.rel (%p524) target = $region76
        $region75: #{tpu_custom_call.1} parent=71 // pred_region
          %527 = dma.done %s520, 128
        $region76: #{tpu_custom_call.1} parent=71 // pred_fallthru
          _
        // Predicated region
        $region77: #{tpu_custom_call.1} parent=71 // pred_check
          %p528 = pneg %p78
        $region78: #{tpu_custom_call.1} parent=71 // pred_check_branch
          %530 = sbr.rel (%p528) target = $region80
        $region79: #{tpu_custom_call.1} parent=71 // pred_region
          %531 = dma.done [#allocation6], 256
        $region80: #{tpu_custom_call.1} parent=71 // pred_fallthru
          _
        // Predicated region
        $region81: #{tpu_custom_call.1} parent=71 // pred_check
          %p532 = pneg %p99
        $region82: #{tpu_custom_call.1} parent=71 // pred_check_branch
          %534 = sbr.rel (%p532) target = $region84
        $region83: #{tpu_custom_call.1} parent=71 // pred_region
          %535 = dma.done [#allocation6], 16
        $region84: #{tpu_custom_call.1} parent=71 // pred_fallthru
          _
        // Predicated region
        $region85: #{tpu_custom_call.1} parent=71 // pred_check
          %p536 = pneg %p120
        $region86: #{tpu_custom_call.1} parent=71 // pred_check_branch
          %538 = sbr.rel (%p536) target = $region88
        $region87: #{tpu_custom_call.1} parent=71 // pred_region
          %539 = dma.done [#allocation9], 256
        $region88: #{tpu_custom_call.1} parent=71 // pred_fallthru
          _
        // Predicated region
        $region89: #{tpu_custom_call.1} parent=71 // pred_check
          %p540 = pneg %p141
        $region90: #{tpu_custom_call.1} parent=71 // pred_check_branch
          %542 = sbr.rel (%p540) target = $region92
        $region91: #{tpu_custom_call.1} parent=71 // pred_region
          %543 = dma.done [#allocation9], 16
        $region92: #{tpu_custom_call.1} parent=71 // pred_fallthru
          _
        // Predicated region
        $region93: #{tpu_custom_call.1} parent=71 // pred_check
          %p544 = pneg %p162
        $region94: #{tpu_custom_call.1} parent=71 // pred_check_branch
          %546 = sbr.rel (%p544) target = $region96
        $region95: #{tpu_custom_call.1} parent=71 // pred_region
          %547 = dma.done [#allocation12], 16
        $region96: #{tpu_custom_call.1} parent=71 // pred_fallthru
          _
        // Predicated region
        $region97: #{tpu_custom_call.1} parent=71 // pred_check
          %p548 = pneg %p183
        $region98: #{tpu_custom_call.1} parent=71 // pred_check_branch
          %550 = sbr.rel (%p548) target = $region100
        $region99: #{tpu_custom_call.1} parent=71 // pred_region
          %551 = dma.done [#allocation12], 16
        $region100: #{tpu_custom_call.1} parent=71 // pred_fallthru
          _
        // Predicated region
        $region101: #{tpu_custom_call.1} parent=71 // pred_check
          %p552 = pneg %p204
        $region102: #{tpu_custom_call.1} parent=71 // pred_check_branch
          %554 = sbr.rel (%p552) target = $region104
        $region103: #{tpu_custom_call.1} parent=71 // pred_region
          %555 = dma.done [#allocation15], 256
        $region104: #{tpu_custom_call.1} parent=71 // pred_fallthru
          _
        // Predicated region
        $region105: #{tpu_custom_call.1} parent=71 // pred_check
          %p556 = pneg %p225
        $region106: #{tpu_custom_call.1} parent=71 // pred_check_branch
          %558 = sbr.rel (%p556) target = $region108
        $region107: #{tpu_custom_call.1} parent=71 // pred_region
          %559 = dma.done [#allocation15], 16
        $region108: #{tpu_custom_call.1} parent=71 // pred_fallthru
          _
        // Predicated region
        $region109: #{tpu_custom_call.1} parent=71 // pred_check
          %p560 = pneg %p246
        $region110: #{tpu_custom_call.1} parent=71 // pred_check_branch
          %562 = sbr.rel (%p560) target = $region112
        $region111: #{tpu_custom_call.1} parent=71 // pred_region
          %563 = dma.done [#allocation18], 1024
        $region112: #{tpu_custom_call.1} parent=71 // pred_fallthru
          _
        // Predicated region
        $region113: #{tpu_custom_call.1} parent=71 // pred_check
          %p564 = pneg %p267
        $region114: #{tpu_custom_call.1} parent=71 // pred_check_branch
          %566 = sbr.rel (%p564) target = $region116
        $region115: #{tpu_custom_call.1} parent=71 // pred_region
          %567 = dma.done [#allocation18], 16
        $region116: #{tpu_custom_call.1} parent=71 // pred_fallthru
          _
        // Predicated region
        $region117: #{tpu_custom_call.1} parent=71 // pred_check
          %p568 = pneg %p288
        $region118: #{tpu_custom_call.1} parent=71 // pred_check_branch
          %570 = sbr.rel (%p568) target = $region120
        $region119: #{tpu_custom_call.1} parent=71 // pred_region
          %571 = dma.done [#allocation21], 16
        $region120: #{tpu_custom_call.1} parent=71 // pred_fallthru
          _
        // Predicated region
        $region121: #{tpu_custom_call.1} parent=71 // pred_check
          %p572 = pneg %p309
        $region122: #{tpu_custom_call.1} parent=71 // pred_check_branch
          %574 = sbr.rel (%p572) target = $region124
        $region123: #{tpu_custom_call.1} parent=71 // pred_region
          %575 = dma.done [#allocation21], 16
        $region124: #{tpu_custom_call.1} parent=71 // pred_fallthru
          _
        %s576 = sand.u32 %s44, 1
        %s577 = scalar_lea.sflag [#allocation3], %s576
        %s578 = sand.u32 %s44, 1
        %s579 = smul.addr %s578, 8
        %s580 = scalar_lea.vmem [#allocation2], %s579
        %p581 = pneg %p57
        %p582 = pneg %p54
        %p583 = pneg %p78
        %p584 = pneg %p75
        %p585 = pneg %p99
        %p586 = pneg %p96
        %p587 = pneg %p120
        %p588 = pneg %p117
        %p589 = pneg %p141
        %p590 = pneg %p138
        %p591 = pneg %p162
        %p592 = pneg %p159
        %p593 = pneg %p183
        %p594 = pneg %p180
        %p595 = pneg %p204
        %p596 = pneg %p201
        %p597 = pneg %p225
        %p598 = pneg %p222
        %p599 = pneg %p246
        %p600 = pneg %p243
        %p601 = pneg %p267
        %p602 = pneg %p264
        %p603 = pneg %p288
        %p604 = pneg %p285
        %p605 = pneg %p309
        %p606 = pneg %p306
        %p607 = pneg %p335
        %p608 = pneg %p332
        %s609 = sand.u32 %s322, 1
        %s610 = scalar_lea.sflag [#allocation4], %s609
        %s611 = sand.u32 %s322, 1
        %s612 = smul.addr %s611, 8
        %s613 = scalar_lea.vmem [#allocation23], %s612
        %v615 = vld [vmem:[%s523] sm:$0xff]
        %v616 = vpack.c.bf16 %v615, %v615
        %v617 = vld [vmem:[#allocation5] sm:$0xf]
        %v618 = vld [vmem:[#allocation5 + $0x4] sm:$0xf]
        %v619 = vld [vmem:[#allocation5 + $0x8] sm:$0xf]
        %v620 = vld [vmem:[#allocation5 + $0xc] sm:$0xf]
        %v621 = vld [vmem:[#allocation7] sm:$0x1]
        %v623 = vlaneseq
        %v624 = vshrl.u32 %v623, 7
        %v625 = vsub.s32 0, %v624
        %v626 = vrot.slane %v621, %v625
        %v632 = vunpack.c.l.b16 %v617
        %v633 = vunpack.c.l.b16 %v618
        %v634 = vunpack.c.l.b16 %v619
        %v635 = vunpack.c.l.b16 %v620
        %v636 = vpack.c.b16 %v633, %v632
        %v637 = vpack.c.b16 %v635, %v634
        %vm640 = vcmask 261120
        %v642 = vsel %vm640, %v616, 0
        %644 = vmatprep.subr.bf16.mxu0 0
        %645 = vmatpush1.bf16.msra.mxu0 %v636
        %646 = vmatprep.subr.bf16.mxu0 0
        %647 = vmatpush1.bf16.msra.mxu0 %v637
        %648 = vmatprep.subr.bf16.mxu0 0
        %649 = vmatpush1.bf16.msra.mxu0 0
        %650 = vmatprep.subr.bf16.mxu0 0
        %651 = vmatpush1.bf16.msra.mxu0 0
        %652 = vmatprep.subr.bf16.mxu0 0
        %653 = vmatpush1.bf16.msra.mxu0 0
        %654 = vmatprep.subr.bf16.mxu0 0
        %655 = vmatpush1.bf16.msra.mxu0 0
        %656 = vmatprep.subr.bf16.mxu0 0
        %657 = vmatpush1.bf16.msra.mxu0 0
        %658 = vmatprep.subr.bf16.mxu0 0
        %659 = vmatpush1.bf16.msra.mxu0 0
        %660 = vmatprep.subr.bf16.mxu0 0
        %661 = vmatpush1.bf16.msra.mxu0 0
        %662 = vmatprep.subr.bf16.mxu0 0
        %663 = vmatpush1.bf16.msra.mxu0 0
        %664 = vmatprep.subr.bf16.mxu0 0
        %665 = vmatpush1.bf16.msra.mxu0 0
        %666 = vmatprep.subr.bf16.mxu0 0
        %667 = vmatpush1.bf16.msra.mxu0 0
        %668 = vmatprep.subr.bf16.mxu0 0
        %669 = vmatpush1.bf16.msra.mxu0 0
        %670 = vmatprep.subr.bf16.mxu0 0
        %671 = vmatpush1.bf16.msra.mxu0 0
        %672 = vmatprep.subr.bf16.mxu0 0
        %673 = vmatpush1.bf16.msra.mxu0 0
        %674 = vmatprep.subr.bf16.mxu0 0
        %675 = vmatpush1.bf16.msra.mxu0 0
        %676 = vmatprep.mubr.bf16.mxu0 0
        %677 = vmatmul.mubr.bf16.gmra.mrb[0].mxu0 %v642
        %v678 = vpop.f32.mrb[0].mxu0
        %v679 = vadd.f32 %v626, %v678
        %v680 = vpop.f32.mrb[0].mxu0
        %v681 = vpop.f32.mrb[0].mxu0
        %v682 = vpop.f32.mrb[0].mxu0
        %683 = vdwg.mxu0
        %v684 = vpack.c.bf16 %v679, %v679
        %v685 = vld [vmem:[#allocation8] sm:$0xf]
        %v686 = vld [vmem:[#allocation8 + $0x4] sm:$0xf]
        %v687 = vld [vmem:[#allocation8 + $0x8] sm:$0xf]
        %v688 = vld [vmem:[#allocation8 + $0xc] sm:$0xf]
        %690 = vrot.lane.b32.xlu0 %v684, 96
        %v691 = vpop.permute.xlu0 %690
        %vm692 = vcmask 64512
        %v694 = vsel %vm692, %v684, 0
        %v697 = vsel %vm692, %v691, 0
        %699 = vmatprep.subr.bf16.mxu0 0
        %700 = vmatpush1.bf16.xpose.msra.mxu0 %v697
        %701 = vmatprep.subr.bf16.mxu0 0
        %702 = vmatpush1.bf16.xpose.msra.mxu0 0
        %703 = vmatprep.subr.bf16.mxu0 0
        %704 = vmatpush1.bf16.xpose.msra.mxu0 0
        %705 = vmatprep.subr.bf16.mxu0 0
        %706 = vmatpush1.bf16.xpose.msra.mxu0 0
        %707 = vmatprep.subr.bf16.mxu0 0
        %708 = vmatpush1.bf16.xpose.msra.mxu0 0
        %709 = vmatprep.subr.bf16.mxu0 0
        %710 = vmatpush1.bf16.xpose.msra.mxu0 0
        %711 = vmatprep.subr.bf16.mxu0 0
        %712 = vmatpush1.bf16.xpose.msra.mxu0 0
        %713 = vmatprep.subr.bf16.mxu0 0
        %714 = vmatpush1.bf16.xpose.msra.mxu0 0
        %715 = vmatprep.subr.bf16.mxu0 0
        %716 = vmatpush1.bf16.xpose.msra.mxu0 0
        %717 = vmatprep.subr.bf16.mxu0 0
        %718 = vmatpush1.bf16.xpose.msra.mxu0 0
        %719 = vmatprep.subr.bf16.mxu0 0
        %720 = vmatpush1.bf16.xpose.msra.mxu0 0
        %721 = vmatprep.subr.bf16.mxu0 0
        %722 = vmatpush1.bf16.xpose.msra.mxu0 0
        %723 = vmatprep.subr.bf16.mxu0 0
        %724 = vmatpush1.bf16.xpose.msra.mxu0 0
        %725 = vmatprep.subr.bf16.mxu0 0
        %726 = vmatpush1.bf16.xpose.msra.mxu0 0
        %727 = vmatprep.subr.bf16.mxu0 0
        %728 = vmatpush1.bf16.xpose.msra.mxu0 0
        %729 = vmatprep.subr.bf16.mxu0 0
        %730 = vmatpush1.bf16.xpose.msra.mxu0 0
        %731 = vmatprep.mubr.bf16.mxu0 0
        %732 = vmatmul.mubr.bf16.gmra.mrb[0].mxu0 %v694
        %v733 = vpop.f32.mrb[0].mxu0
        %v734 = vadd.f32 0.0, %v733
        %v735 = vpop.f32.mrb[0].mxu0
        %v736 = vpop.f32.mrb[0].mxu0
        %v737 = vpop.f32.mrb[0].mxu0
        %738 = vdwg.mxu0
        %v739 = vmul.f32 %v734, 0.35355338
        %v740 = vsel %vm692, %v739, -inf
        %741 = vmax.xlane.f32.xlu0 %v740
        %v742 = vpop.xlane.xlu0 %741
        %v743 = vsub.f32 %v739, %v742
        %v744 = vmul.f32 %v743, 1.442695
        %v745 = vpow.pop %v744
        %v746 = vsel %vm692, %v745, 0.0
        %747 = vadd.xlane.f32.xlu0 %v746
        %v748 = vpop.xlane.xlu0 %747
        %v749 = vrcp.pop %v748
        %v750 = vmul.f32 %v745, %v749
        %v751 = vpack.c.bf16 %v750, %v750
        %752 = vrot.lane.b32.xlu0 %v684, 64
        %v753 = vpop.permute.xlu0 %752
        %v755 = vsel %vm692, %v751, 0
        %vm757 = vcmask 1043456
        %v759 = vsel %vm757, %v753, 0
        %761 = vmatprep.subr.bf16.mxu0 0
        %762 = vmatpush1.bf16.msra.mxu0 %v759
        %763 = vmatprep.subr.bf16.mxu0 0
        %764 = vmatpush1.bf16.msra.mxu0 0
        %765 = vmatprep.subr.bf16.mxu0 0
        %766 = vmatpush1.bf16.msra.mxu0 0
        %767 = vmatprep.subr.bf16.mxu0 0
        %768 = vmatpush1.bf16.msra.mxu0 0
        %769 = vmatprep.subr.bf16.mxu0 0
        %770 = vmatpush1.bf16.msra.mxu0 0
        %771 = vmatprep.subr.bf16.mxu0 0
        %772 = vmatpush1.bf16.msra.mxu0 0
        %773 = vmatprep.subr.bf16.mxu0 0
        %774 = vmatpush1.bf16.msra.mxu0 0
        %775 = vmatprep.subr.bf16.mxu0 0
        %776 = vmatpush1.bf16.msra.mxu0 0
        %777 = vmatprep.subr.bf16.mxu0 0
        %778 = vmatpush1.bf16.msra.mxu0 0
        %779 = vmatprep.subr.bf16.mxu0 0
        %780 = vmatpush1.bf16.msra.mxu0 0
        %781 = vmatprep.subr.bf16.mxu0 0
        %782 = vmatpush1.bf16.msra.mxu0 0
        %783 = vmatprep.subr.bf16.mxu0 0
        %784 = vmatpush1.bf16.msra.mxu0 0
        %785 = vmatprep.subr.bf16.mxu0 0
        %786 = vmatpush1.bf16.msra.mxu0 0
        %787 = vmatprep.subr.bf16.mxu0 0
        %788 = vmatpush1.bf16.msra.mxu0 0
        %789 = vmatprep.subr.bf16.mxu0 0
        %790 = vmatpush1.bf16.msra.mxu0 0
        %791 = vmatprep.subr.bf16.mxu0 0
        %792 = vmatpush1.bf16.msra.mxu0 0
        %793 = vmatprep.mubr.bf16.mxu0 0
        %794 = vmatmul.mubr.bf16.gmra.mrb[0].mxu0 %v755
        %v795 = vpop.f32.mrb[0].mxu0
        %v796 = vadd.f32 0.0, %v795
        %v797 = vpop.f32.mrb[0].mxu0
        %v798 = vpop.f32.mrb[0].mxu0
        %v799 = vpop.f32.mrb[0].mxu0
        %800 = vdwg.mxu0
        %v801 = vpack.c.bf16 %v796, %v796
        %802 = vrot.lane.b32.xlu0 %v684, 120
        %v803 = vpop.permute.xlu0 %802
        %804 = vrot.lane.b32.xlu0 %v684, 88
        %v805 = vpop.permute.xlu0 %804
        %v807 = vsel %vm692, %v803, 0
        %v810 = vsel %vm692, %v805, 0
        %812 = vmatprep.subr.bf16.mxu0 0
        %813 = vmatpush1.bf16.xpose.msra.mxu0 %v810
        %814 = vmatprep.subr.bf16.mxu0 0
        %815 = vmatpush1.bf16.xpose.msra.mxu0 0
        %816 = vmatprep.subr.bf16.mxu0 0
        %817 = vmatpush1.bf16.xpose.msra.mxu0 0
        %818 = vmatprep.subr.bf16.mxu0 0
        %819 = vmatpush1.bf16.xpose.msra.mxu0 0
        %820 = vmatprep.subr.bf16.mxu0 0
        %821 = vmatpush1.bf16.xpose.msra.mxu0 0
        %822 = vmatprep.subr.bf16.mxu0 0
        %823 = vmatpush1.bf16.xpose.msra.mxu0 0
        %824 = vmatprep.subr.bf16.mxu0 0
        %825 = vmatpush1.bf16.xpose.msra.mxu0 0
        %826 = vmatprep.subr.bf16.mxu0 0
        %827 = vmatpush1.bf16.xpose.msra.mxu0 0
        %828 = vmatprep.subr.bf16.mxu0 0
        %829 = vmatpush1.bf16.xpose.msra.mxu0 0
        %830 = vmatprep.subr.bf16.mxu0 0
        %831 = vmatpush1.bf16.xpose.msra.mxu0 0
        %832 = vmatprep.subr.bf16.mxu0 0
        %833 = vmatpush1.bf16.xpose.msra.mxu0 0
        %834 = vmatprep.subr.bf16.mxu0 0
        %835 = vmatpush1.bf16.xpose.msra.mxu0 0
        %836 = vmatprep.subr.bf16.mxu0 0
        %837 = vmatpush1.bf16.xpose.msra.mxu0 0
        %838 = vmatprep.subr.bf16.mxu0 0
        %839 = vmatpush1.bf16.xpose.msra.mxu0 0
        %840 = vmatprep.subr.bf16.mxu0 0
        %841 = vmatpush1.bf16.xpose.msra.mxu0 0
        %842 = vmatprep.subr.bf16.mxu0 0
        %843 = vmatpush1.bf16.xpose.msra.mxu0 0
        %844 = vmatprep.mubr.bf16.mxu0 0
        %845 = vmatmul.mubr.bf16.gmra.mrb[0].mxu0 %v807
        %v846 = vpop.f32.mrb[0].mxu0
        %v847 = vadd.f32 0.0, %v846
        %v848 = vpop.f32.mrb[0].mxu0
        %v849 = vpop.f32.mrb[0].mxu0
        %v850 = vpop.f32.mrb[0].mxu0
        %851 = vdwg.mxu0
        %v852 = vmul.f32 %v847, 0.35355338
        %v853 = vsel %vm692, %v852, -inf
        %854 = vmax.xlane.f32.xlu0 %v853
        %v855 = vpop.xlane.xlu0 %854
        %v856 = vsub.f32 %v852, %v855
        %v857 = vmul.f32 %v856, 1.442695
        %v858 = vpow.pop %v857
        %v859 = vsel %vm692, %v858, 0.0
        %860 = vadd.xlane.f32.xlu0 %v859
        %v861 = vpop.xlane.xlu0 %860
        %v862 = vrcp.pop %v861
        %v863 = vmul.f32 %v858, %v862
        %v864 = vpack.c.bf16 %v863, %v863
        %865 = vrot.lane.b32.xlu0 %v684, 56
        %v866 = vpop.permute.xlu0 %865
        %v868 = vsel %vm692, %v864, 0
        %v871 = vsel %vm757, %v866, 0
        %873 = vmatprep.subr.bf16.mxu0 0
        %874 = vmatpush1.bf16.msra.mxu0 %v871
        %875 = vmatprep.subr.bf16.mxu0 0
        %876 = vmatpush1.bf16.msra.mxu0 0
        %877 = vmatprep.subr.bf16.mxu0 0
        %878 = vmatpush1.bf16.msra.mxu0 0
        %879 = vmatprep.subr.bf16.mxu0 0
        %880 = vmatpush1.bf16.msra.mxu0 0
        %881 = vmatprep.subr.bf16.mxu0 0
        %882 = vmatpush1.bf16.msra.mxu0 0
        %883 = vmatprep.subr.bf16.mxu0 0
        %884 = vmatpush1.bf16.msra.mxu0 0
        %885 = vmatprep.subr.bf16.mxu0 0
        %886 = vmatpush1.bf16.msra.mxu0 0
        %887 = vmatprep.subr.bf16.mxu0 0
        %888 = vmatpush1.bf16.msra.mxu0 0
        %889 = vmatprep.subr.bf16.mxu0 0
        %890 = vmatpush1.bf16.msra.mxu0 0
        %891 = vmatprep.subr.bf16.mxu0 0
        %892 = vmatpush1.bf16.msra.mxu0 0
        %893 = vmatprep.subr.bf16.mxu0 0
        %894 = vmatpush1.bf16.msra.mxu0 0
        %895 = vmatprep.subr.bf16.mxu0 0
        %896 = vmatpush1.bf16.msra.mxu0 0
        %897 = vmatprep.subr.bf16.mxu0 0
        %898 = vmatpush1.bf16.msra.mxu0 0
        %899 = vmatprep.subr.bf16.mxu0 0
        %900 = vmatpush1.bf16.msra.mxu0 0
        %901 = vmatprep.subr.bf16.mxu0 0
        %902 = vmatpush1.bf16.msra.mxu0 0
        %903 = vmatprep.subr.bf16.mxu0 0
        %904 = vmatpush1.bf16.msra.mxu0 0
        %905 = vmatprep.mubr.bf16.mxu0 0
        %906 = vmatmul.mubr.bf16.gmra.mrb[0].mxu0 %v868
        %v907 = vpop.f32.mrb[0].mxu0
        %v908 = vadd.f32 0.0, %v907
        %v909 = vpop.f32.mrb[0].mxu0
        %v910 = vpop.f32.mrb[0].mxu0
        %v911 = vpop.f32.mrb[0].mxu0
        %912 = vdwg.mxu0
        %v913 = vpack.c.bf16 %v908, %v908
        %v915 = vsel %vm692, %v913, 0
        %v918 = vsel %vm757, %v686, 0
        %920 = vmatprep.subr.bf16.mxu0 0
        %921 = vmatpush1.bf16.msra.mxu0 %v918
        %922 = vmatprep.subr.bf16.mxu0 0
        %923 = vmatpush1.bf16.msra.mxu0 0
        %924 = vmatprep.subr.bf16.mxu0 0
        %925 = vmatpush1.bf16.msra.mxu0 0
        %926 = vmatprep.subr.bf16.mxu0 0
        %927 = vmatpush1.bf16.msra.mxu0 0
        %928 = vmatprep.subr.bf16.mxu0 0
        %929 = vmatpush1.bf16.msra.mxu0 0
        %930 = vmatprep.subr.bf16.mxu0 0
        %931 = vmatpush1.bf16.msra.mxu0 0
        %932 = vmatprep.subr.bf16.mxu0 0
        %933 = vmatpush1.bf16.msra.mxu0 0
        %934 = vmatprep.subr.bf16.mxu0 0
        %935 = vmatpush1.bf16.msra.mxu0 0
        %936 = vmatprep.subr.bf16.mxu0 0
        %937 = vmatpush1.bf16.msra.mxu0 0
        %938 = vmatprep.subr.bf16.mxu0 0
        %939 = vmatpush1.bf16.msra.mxu0 0
        %940 = vmatprep.subr.bf16.mxu0 0
        %941 = vmatpush1.bf16.msra.mxu0 0
        %942 = vmatprep.subr.bf16.mxu0 0
        %943 = vmatpush1.bf16.msra.mxu0 0
        %944 = vmatprep.subr.bf16.mxu0 0
        %945 = vmatpush1.bf16.msra.mxu0 0
        %946 = vmatprep.subr.bf16.mxu0 0
        %947 = vmatpush1.bf16.msra.mxu0 0
        %948 = vmatprep.subr.bf16.mxu0 0
        %949 = vmatpush1.bf16.msra.mxu0 0
        %950 = vmatprep.subr.bf16.mxu0 0
        %951 = vmatpush1.bf16.msra.mxu0 0
        %952 = vmatprep.mubr.bf16.mxu0 0
        %953 = vmatmul.mubr.bf16.gmra.mrb[0].mxu0 %v915
        %v954 = vpop.f32.mrb[0].mxu0
        %v955 = vadd.f32 0.0, %v954
        %v956 = vpop.f32.mrb[0].mxu0
        %v957 = vpop.f32.mrb[0].mxu0
        %v958 = vpop.f32.mrb[0].mxu0
        %959 = vdwg.mxu0
        %v961 = vsel %vm692, %v801, 0
        %v964 = vsel %vm757, %v685, 0
        %966 = vmatprep.subr.bf16.mxu0 0
        %967 = vmatpush1.bf16.msra.mxu0 %v964
        %968 = vmatprep.subr.bf16.mxu0 0
        %969 = vmatpush1.bf16.msra.mxu0 0
        %970 = vmatprep.subr.bf16.mxu0 0
        %971 = vmatpush1.bf16.msra.mxu0 0
        %972 = vmatprep.subr.bf16.mxu0 0
        %973 = vmatpush1.bf16.msra.mxu0 0
        %974 = vmatprep.subr.bf16.mxu0 0
        %975 = vmatpush1.bf16.msra.mxu0 0
        %976 = vmatprep.subr.bf16.mxu0 0
        %977 = vmatpush1.bf16.msra.mxu0 0
        %978 = vmatprep.subr.bf16.mxu0 0
        %979 = vmatpush1.bf16.msra.mxu0 0
        %980 = vmatprep.subr.bf16.mxu0 0
        %981 = vmatpush1.bf16.msra.mxu0 0
        %982 = vmatprep.subr.bf16.mxu0 0
        %983 = vmatpush1.bf16.msra.mxu0 0
        %984 = vmatprep.subr.bf16.mxu0 0
        %985 = vmatpush1.bf16.msra.mxu0 0
        %986 = vmatprep.subr.bf16.mxu0 0
        %987 = vmatpush1.bf16.msra.mxu0 0
        %988 = vmatprep.subr.bf16.mxu0 0
        %989 = vmatpush1.bf16.msra.mxu0 0
        %990 = vmatprep.subr.bf16.mxu0 0
        %991 = vmatpush1.bf16.msra.mxu0 0
        %992 = vmatprep.subr.bf16.mxu0 0
        %993 = vmatpush1.bf16.msra.mxu0 0
        %994 = vmatprep.subr.bf16.mxu0 0
        %995 = vmatpush1.bf16.msra.mxu0 0
        %996 = vmatprep.subr.bf16.mxu0 0
        %997 = vmatpush1.bf16.msra.mxu0 0
        %998 = vmatprep.mubr.bf16.mxu0 0
        %999 = vmatmul.mubr.bf16.gmra.mrb[0].mxu0 %v961
        %v1000 = vpop.f32.mrb[0].mxu0
        %v1001 = vadd.f32 %v955, %v1000
        %v1002 = vpop.f32.mrb[0].mxu0
        %v1003 = vpop.f32.mrb[0].mxu0
        %v1004 = vpop.f32.mrb[0].mxu0
        %1005 = vdwg.mxu0
        %1006 = vrot.lane.b32.xlu0 %v684, 112
        %v1007 = vpop.permute.xlu0 %1006
        %1008 = vrot.lane.b32.xlu0 %v684, 80
        %v1009 = vpop.permute.xlu0 %1008
        %v1011 = vsel %vm692, %v1007, 0
        %v1014 = vsel %vm692, %v1009, 0
        %1016 = vmatprep.subr.bf16.mxu0 0
        %1017 = vmatpush1.bf16.xpose.msra.mxu0 %v1014
        %1018 = vmatprep.subr.bf16.mxu0 0
        %1019 = vmatpush1.bf16.xpose.msra.mxu0 0
        %1020 = vmatprep.subr.bf16.mxu0 0
        %1021 = vmatpush1.bf16.xpose.msra.mxu0 0
        %1022 = vmatprep.subr.bf16.mxu0 0
        %1023 = vmatpush1.bf16.xpose.msra.mxu0 0
        %1024 = vmatprep.subr.bf16.mxu0 0
        %1025 = vmatpush1.bf16.xpose.msra.mxu0 0
        %1026 = vmatprep.subr.bf16.mxu0 0
        %1027 = vmatpush1.bf16.xpose.msra.mxu0 0
        %1028 = vmatprep.subr.bf16.mxu0 0
        %1029 = vmatpush1.bf16.xpose.msra.mxu0 0
        %1030 = vmatprep.subr.bf16.mxu0 0
        %1031 = vmatpush1.bf16.xpose.msra.mxu0 0
        %1032 = vmatprep.subr.bf16.mxu0 0
        %1033 = vmatpush1.bf16.xpose.msra.mxu0 0
        %1034 = vmatprep.subr.bf16.mxu0 0
        %1035 = vmatpush1.bf16.xpose.msra.mxu0 0
        %1036 = vmatprep.subr.bf16.mxu0 0
        %1037 = vmatpush1.bf16.xpose.msra.mxu0 0
        %1038 = vmatprep.subr.bf16.mxu0 0
        %1039 = vmatpush1.bf16.xpose.msra.mxu0 0
        %1040 = vmatprep.subr.bf16.mxu0 0
        %1041 = vmatpush1.bf16.xpose.msra.mxu0 0
        %1042 = vmatprep.subr.bf16.mxu0 0
        %1043 = vmatpush1.bf16.xpose.msra.mxu0 0
        %1044 = vmatprep.subr.bf16.mxu0 0
        %1045 = vmatpush1.bf16.xpose.msra.mxu0 0
        %1046 = vmatprep.subr.bf16.mxu0 0
        %1047 = vmatpush1.bf16.xpose.msra.mxu0 0
        %1048 = vmatprep.mubr.bf16.mxu0 0
        %1049 = vmatmul.mubr.bf16.gmra.mrb[0].mxu0 %v1011
        %v1050 = vpop.f32.mrb[0].mxu0
        %v1051 = vadd.f32 0.0, %v1050
        %v1052 = vpop.f32.mrb[0].mxu0
        %v1053 = vpop.f32.mrb[0].mxu0
        %v1054 = vpop.f32.mrb[0].mxu0
        %1055 = vdwg.mxu0
        %v1056 = vmul.f32 %v1051, 0.35355338
        %v1057 = vsel %vm692, %v1056, -inf
        %1058 = vmax.xlane.f32.xlu0 %v1057
        %v1059 = vpop.xlane.xlu0 %1058
        %v1060 = vsub.f32 %v1056, %v1059
        %v1061 = vmul.f32 %v1060, 1.442695
        %v1062 = vpow.pop %v1061
        %v1063 = vsel %vm692, %v1062, 0.0
        %1064 = vadd.xlane.f32.xlu0 %v1063
        %v1065 = vpop.xlane.xlu0 %1064
        %v1066 = vrcp.pop %v1065
        %v1067 = vmul.f32 %v1062, %v1066
        %v1068 = vpack.c.bf16 %v1067, %v1067
        %1069 = vrot.lane.b32.xlu0 %v684, 48
        %v1070 = vpop.permute.xlu0 %1069
        %v1072 = vsel %vm692, %v1068, 0
        %v1075 = vsel %vm757, %v1070, 0
        %1077 = vmatprep.subr.bf16.mxu0 0
        %1078 = vmatpush1.bf16.msra.mxu0 %v1075
        %1079 = vmatprep.subr.bf16.mxu0 0
        %1080 = vmatpush1.bf16.msra.mxu0 0
        %1081 = vmatprep.subr.bf16.mxu0 0
        %1082 = vmatpush1.bf16.msra.mxu0 0
        %1083 = vmatprep.subr.bf16.mxu0 0
        %1084 = vmatpush1.bf16.msra.mxu0 0
        %1085 = vmatprep.subr.bf16.mxu0 0
        %1086 = vmatpush1.bf16.msra.mxu0 0
        %1087 = vmatprep.subr.bf16.mxu0 0
        %1088 = vmatpush1.bf16.msra.mxu0 0
        %1089 = vmatprep.subr.bf16.mxu0 0
        %1090 = vmatpush1.bf16.msra.mxu0 0
        %1091 = vmatprep.subr.bf16.mxu0 0
        %1092 = vmatpush1.bf16.msra.mxu0 0
        %1093 = vmatprep.subr.bf16.mxu0 0
        %1094 = vmatpush1.bf16.msra.mxu0 0
        %1095 = vmatprep.subr.bf16.mxu0 0
        %1096 = vmatpush1.bf16.msra.mxu0 0
        %1097 = vmatprep.subr.bf16.mxu0 0
        %1098 = vmatpush1.bf16.msra.mxu0 0
        %1099 = vmatprep.subr.bf16.mxu0 0
        %1100 = vmatpush1.bf16.msra.mxu0 0
        %1101 = vmatprep.subr.bf16.mxu0 0
        %1102 = vmatpush1.bf16.msra.mxu0 0
        %1103 = vmatprep.subr.bf16.mxu0 0
        %1104 = vmatpush1.bf16.msra.mxu0 0
        %1105 = vmatprep.subr.bf16.mxu0 0
        %1106 = vmatpush1.bf16.msra.mxu0 0
        %1107 = vmatprep.subr.bf16.mxu0 0
        %1108 = vmatpush1.bf16.msra.mxu0 0
        %1109 = vmatprep.mubr.bf16.mxu0 0
        %1110 = vmatmul.mubr.bf16.gmra.mrb[0].mxu0 %v1072
        %v1111 = vpop.f32.mrb[0].mxu0
        %v1112 = vadd.f32 0.0, %v1111
        %v1113 = vpop.f32.mrb[0].mxu0
        %v1114 = vpop.f32.mrb[0].mxu0
        %v1115 = vpop.f32.mrb[0].mxu0
        %1116 = vdwg.mxu0
        %v1117 = vpack.c.bf16 %v1112, %v1112
        %v1119 = vsel %vm692, %v1117, 0
        %v1122 = vsel %vm757, %v687, 0
        %1124 = vmatprep.subr.bf16.mxu0 0
        %1125 = vmatpush1.bf16.msra.mxu0 %v1122
        %1126 = vmatprep.subr.bf16.mxu0 0
        %1127 = vmatpush1.bf16.msra.mxu0 0
        %1128 = vmatprep.subr.bf16.mxu0 0
        %1129 = vmatpush1.bf16.msra.mxu0 0
        %1130 = vmatprep.subr.bf16.mxu0 0
        %1131 = vmatpush1.bf16.msra.mxu0 0
        %1132 = vmatprep.subr.bf16.mxu0 0
        %1133 = vmatpush1.bf16.msra.mxu0 0
        %1134 = vmatprep.subr.bf16.mxu0 0
        %1135 = vmatpush1.bf16.msra.mxu0 0
        %1136 = vmatprep.subr.bf16.mxu0 0
        %1137 = vmatpush1.bf16.msra.mxu0 0
        %1138 = vmatprep.subr.bf16.mxu0 0
        %1139 = vmatpush1.bf16.msra.mxu0 0
        %1140 = vmatprep.subr.bf16.mxu0 0
        %1141 = vmatpush1.bf16.msra.mxu0 0
        %1142 = vmatprep.subr.bf16.mxu0 0
        %1143 = vmatpush1.bf16.msra.mxu0 0
        %1144 = vmatprep.subr.bf16.mxu0 0
        %1145 = vmatpush1.bf16.msra.mxu0 0
        %1146 = vmatprep.subr.bf16.mxu0 0
        %1147 = vmatpush1.bf16.msra.mxu0 0
        %1148 = vmatprep.subr.bf16.mxu0 0
        %1149 = vmatpush1.bf16.msra.mxu0 0
        %1150 = vmatprep.subr.bf16.mxu0 0
        %1151 = vmatpush1.bf16.msra.mxu0 0
        %1152 = vmatprep.subr.bf16.mxu0 0
        %1153 = vmatpush1.bf16.msra.mxu0 0
        %1154 = vmatprep.subr.bf16.mxu0 0
        %1155 = vmatpush1.bf16.msra.mxu0 0
        %1156 = vmatprep.mubr.bf16.mxu0 0
        %1157 = vmatmul.mubr.bf16.gmra.mrb[0].mxu0 %v1119
        %v1158 = vpop.f32.mrb[0].mxu0
        %v1159 = vadd.f32 0.0, %v1158
        %v1160 = vpop.f32.mrb[0].mxu0
        %v1161 = vpop.f32.mrb[0].mxu0
        %v1162 = vpop.f32.mrb[0].mxu0
        %1163 = vdwg.mxu0
        %v1164 = vadd.f32 %v1001, %v1159
        %1165 = vrot.lane.b32.xlu0 %v684, 104
        %v1166 = vpop.permute.xlu0 %1165
        %1167 = vrot.lane.b32.xlu0 %v684, 72
        %v1168 = vpop.permute.xlu0 %1167
        %v1170 = vsel %vm692, %v1166, 0
        %v1173 = vsel %vm692, %v1168, 0
        %1175 = vmatprep.subr.bf16.mxu0 0
        %1176 = vmatpush1.bf16.xpose.msra.mxu0 %v1173
        %1177 = vmatprep.subr.bf16.mxu0 0
        %1178 = vmatpush1.bf16.xpose.msra.mxu0 0
        %1179 = vmatprep.subr.bf16.mxu0 0
        %1180 = vmatpush1.bf16.xpose.msra.mxu0 0
        %1181 = vmatprep.subr.bf16.mxu0 0
        %1182 = vmatpush1.bf16.xpose.msra.mxu0 0
        %1183 = vmatprep.subr.bf16.mxu0 0
        %1184 = vmatpush1.bf16.xpose.msra.mxu0 0
        %1185 = vmatprep.subr.bf16.mxu0 0
        %1186 = vmatpush1.bf16.xpose.msra.mxu0 0
        %1187 = vmatprep.subr.bf16.mxu0 0
        %1188 = vmatpush1.bf16.xpose.msra.mxu0 0
        %1189 = vmatprep.subr.bf16.mxu0 0
        %1190 = vmatpush1.bf16.xpose.msra.mxu0 0
        %1191 = vmatprep.subr.bf16.mxu0 0
        %1192 = vmatpush1.bf16.xpose.msra.mxu0 0
        %1193 = vmatprep.subr.bf16.mxu0 0
        %1194 = vmatpush1.bf16.xpose.msra.mxu0 0
        %1195 = vmatprep.subr.bf16.mxu0 0
        %1196 = vmatpush1.bf16.xpose.msra.mxu0 0
        %1197 = vmatprep.subr.bf16.mxu0 0
        %1198 = vmatpush1.bf16.xpose.msra.mxu0 0
        %1199 = vmatprep.subr.bf16.mxu0 0
        %1200 = vmatpush1.bf16.xpose.msra.mxu0 0
        %1201 = vmatprep.subr.bf16.mxu0 0
        %1202 = vmatpush1.bf16.xpose.msra.mxu0 0
        %1203 = vmatprep.subr.bf16.mxu0 0
        %1204 = vmatpush1.bf16.xpose.msra.mxu0 0
        %1205 = vmatprep.subr.bf16.mxu0 0
        %1206 = vmatpush1.bf16.xpose.msra.mxu0 0
        %1207 = vmatprep.mubr.bf16.mxu0 0
        %1208 = vmatmul.mubr.bf16.gmra.mrb[0].mxu0 %v1170
        %v1209 = vpop.f32.mrb[0].mxu0
        %v1210 = vadd.f32 0.0, %v1209
        %v1211 = vpop.f32.mrb[0].mxu0
        %v1212 = vpop.f32.mrb[0].mxu0
        %v1213 = vpop.f32.mrb[0].mxu0
        %1214 = vdwg.mxu0
        %v1215 = vmul.f32 %v1210, 0.35355338
        %v1216 = vsel %vm692, %v1215, -inf
        %1217 = vmax.xlane.f32.xlu0 %v1216
        %v1218 = vpop.xlane.xlu0 %1217
        %v1219 = vsub.f32 %v1215, %v1218
        %v1220 = vmul.f32 %v1219, 1.442695
        %v1221 = vpow.pop %v1220
        %v1222 = vsel %vm692, %v1221, 0.0
        %1223 = vadd.xlane.f32.xlu0 %v1222
        %v1224 = vpop.xlane.xlu0 %1223
        %v1225 = vrcp.pop %v1224
        %v1226 = vmul.f32 %v1221, %v1225
        %v1227 = vpack.c.bf16 %v1226, %v1226
        %1228 = vrot.lane.b32.xlu0 %v684, 40
        %v1229 = vpop.permute.xlu0 %1228
        %v1231 = vsel %vm692, %v1227, 0
        %v1234 = vsel %vm757, %v1229, 0
        %1236 = vmatprep.subr.bf16.mxu0 0
        %1237 = vmatpush1.bf16.msra.mxu0 %v1234
        %1238 = vmatprep.subr.bf16.mxu0 0
        %1239 = vmatpush1.bf16.msra.mxu0 0
        %1240 = vmatprep.subr.bf16.mxu0 0
        %1241 = vmatpush1.bf16.msra.mxu0 0
        %1242 = vmatprep.subr.bf16.mxu0 0
        %1243 = vmatpush1.bf16.msra.mxu0 0
        %1244 = vmatprep.subr.bf16.mxu0 0
        %1245 = vmatpush1.bf16.msra.mxu0 0
        %1246 = vmatprep.subr.bf16.mxu0 0
        %1247 = vmatpush1.bf16.msra.mxu0 0
        %1248 = vmatprep.subr.bf16.mxu0 0
        %1249 = vmatpush1.bf16.msra.mxu0 0
        %1250 = vmatprep.subr.bf16.mxu0 0
        %1251 = vmatpush1.bf16.msra.mxu0 0
        %1252 = vmatprep.subr.bf16.mxu0 0
        %1253 = vmatpush1.bf16.msra.mxu0 0
        %1254 = vmatprep.subr.bf16.mxu0 0
        %1255 = vmatpush1.bf16.msra.mxu0 0
        %1256 = vmatprep.subr.bf16.mxu0 0
        %1257 = vmatpush1.bf16.msra.mxu0 0
        %1258 = vmatprep.subr.bf16.mxu0 0
        %1259 = vmatpush1.bf16.msra.mxu0 0
        %1260 = vmatprep.subr.bf16.mxu0 0
        %1261 = vmatpush1.bf16.msra.mxu0 0
        %1262 = vmatprep.subr.bf16.mxu0 0
        %1263 = vmatpush1.bf16.msra.mxu0 0
        %1264 = vmatprep.subr.bf16.mxu0 0
        %1265 = vmatpush1.bf16.msra.mxu0 0
        %1266 = vmatprep.subr.bf16.mxu0 0
        %1267 = vmatpush1.bf16.msra.mxu0 0
        %1268 = vmatprep.mubr.bf16.mxu0 0
        %1269 = vmatmul.mubr.bf16.gmra.mrb[0].mxu0 %v1231
        %v1270 = vpop.f32.mrb[0].mxu0
        %v1271 = vadd.f32 0.0, %v1270
        %v1272 = vpop.f32.mrb[0].mxu0
        %v1273 = vpop.f32.mrb[0].mxu0
        %v1274 = vpop.f32.mrb[0].mxu0
        %1275 = vdwg.mxu0
        %v1276 = vpack.c.bf16 %v1271, %v1271
        %v1278 = vsel %vm692, %v1276, 0
        %v1281 = vsel %vm757, %v688, 0
        %1283 = vmatprep.subr.bf16.mxu0 0
        %1284 = vmatpush1.bf16.msra.mxu0 %v1281
        %1285 = vmatprep.subr.bf16.mxu0 0
        %1286 = vmatpush1.bf16.msra.mxu0 0
        %1287 = vmatprep.subr.bf16.mxu0 0
        %1288 = vmatpush1.bf16.msra.mxu0 0
        %1289 = vmatprep.subr.bf16.mxu0 0
        %1290 = vmatpush1.bf16.msra.mxu0 0
        %1291 = vmatprep.subr.bf16.mxu0 0
        %1292 = vmatpush1.bf16.msra.mxu0 0
        %1293 = vmatprep.subr.bf16.mxu0 0
        %1294 = vmatpush1.bf16.msra.mxu0 0
        %1295 = vmatprep.subr.bf16.mxu0 0
        %1296 = vmatpush1.bf16.msra.mxu0 0
        %1297 = vmatprep.subr.bf16.mxu0 0
        %1298 = vmatpush1.bf16.msra.mxu0 0
        %1299 = vmatprep.subr.bf16.mxu0 0
        %1300 = vmatpush1.bf16.msra.mxu0 0
        %1301 = vmatprep.subr.bf16.mxu0 0
        %1302 = vmatpush1.bf16.msra.mxu0 0
        %1303 = vmatprep.subr.bf16.mxu0 0
        %1304 = vmatpush1.bf16.msra.mxu0 0
        %1305 = vmatprep.subr.bf16.mxu0 0
        %1306 = vmatpush1.bf16.msra.mxu0 0
        %1307 = vmatprep.subr.bf16.mxu0 0
        %1308 = vmatpush1.bf16.msra.mxu0 0
        %1309 = vmatprep.subr.bf16.mxu0 0
        %1310 = vmatpush1.bf16.msra.mxu0 0
        %1311 = vmatprep.subr.bf16.mxu0 0
        %1312 = vmatpush1.bf16.msra.mxu0 0
        %1313 = vmatprep.subr.bf16.mxu0 0
        %1314 = vmatpush1.bf16.msra.mxu0 0
        %1315 = vmatprep.mubr.bf16.mxu0 0
        %1316 = vmatmul.mubr.bf16.gmra.mrb[0].mxu0 %v1278
        %v1317 = vpop.f32.mrb[0].mxu0
        %v1318 = vadd.f32 0.0, %v1317
        %v1319 = vpop.f32.mrb[0].mxu0
        %v1320 = vpop.f32.mrb[0].mxu0
        %v1321 = vpop.f32.mrb[0].mxu0
        %1322 = vdwg.mxu0
        %v1323 = vadd.f32 %v1164, %v1318
        %v1324 = vld [vmem:[#allocation10] sm:$0x1]
        %v1326 = vlaneseq
        %v1327 = vshrl.u32 %v1326, 7
        %v1328 = vsub.s32 0, %v1327
        %v1329 = vrot.slane %v1324, %v1328
        %v1331 = vadd.f32 %v1323, %v1329
        %v1332 = vadd.f32 %v615, %v1331
        %v1333 = vsel %vm640, %v1332, 0.0
        %1334 = vadd.xlane.f32.xlu0 %v1333
        %v1335 = vpop.xlane.xlu0 %1334
        %v1336 = vrcp.pop 32.0
        %v1337 = vmul.f32 %v1335, %v1336
        %v1338 = vsub.f32 %v1332, %v1337
        %v1339 = vmul.f32 %v1338, %v1338
        %v1340 = vsel %vm640, %v1339, 0.0
        %1341 = vadd.xlane.f32.xlu0 %v1340
        %v1342 = vpop.xlane.xlu0 %1341
        %v1343 = vmul.f32 %v1342, %v1336
        %v1344 = vadd.f32 %v1343, 1e-05
        %v1345 = vrsqrt.pop %v1344
        %v1346 = vmul.f32 %v1338, %v1345
        %v1347 = vld [vmem:[#allocation11] sm:$0x1]
        %v1349 = vlaneseq
        %v1350 = vshrl.u32 %v1349, 7
        %v1351 = vsub.s32 0, %v1350
        %v1352 = vrot.slane %v1347, %v1351
        %v1354 = vmul.f32 %v1346, %v1352
        %v1355 = vld [vmem:[#allocation13] sm:$0x1]
        %v1357 = vlaneseq
        %v1358 = vshrl.u32 %v1357, 7
        %v1359 = vsub.s32 0, %v1358
        %v1360 = vrot.slane %v1355, %v1359
        %v1362 = vadd.f32 %v1354, %v1360
        %v1363 = vpack.c.bf16 %v1362, %v1362
        %v1364 = vld [vmem:[#allocation14] sm:$0xf]
        %v1365 = vld [vmem:[#allocation14 + $0x4] sm:$0xf]
        %v1366 = vld [vmem:[#allocation14 + $0x8] sm:$0xf]
        %v1367 = vld [vmem:[#allocation14 + $0xc] sm:$0xf]
        %v1368 = vld [vmem:[#allocation16] sm:$0x1]
        %v1370 = vlaneseq
        %v1371 = vshrl.u32 %v1370, 7
        %v1372 = vsub.s32 0, %v1371
        %v1373 = vrot.slane %v1368, %v1372
        %v1379 = vunpack.c.l.b16 %v1364
        %v1380 = vunpack.c.l.b16 %v1365
        %v1381 = vunpack.c.l.b16 %v1366
        %v1382 = vunpack.c.l.b16 %v1367
        %v1383 = vpack.c.b16 %v1380, %v1379
        %v1384 = vpack.c.b16 %v1382, %v1381
        %v1388 = vsel %vm640, %v1363, 0
        %1390 = vmatprep.subr.bf16.mxu0 0
        %1391 = vmatpush1.bf16.msra.mxu0 %v1383
        %1392 = vmatprep.subr.bf16.mxu0 0
        %1393 = vmatpush1.bf16.msra.mxu0 %v1384
        %1394 = vmatprep.subr.bf16.mxu0 0
        %1395 = vmatpush1.bf16.msra.mxu0 0
        %1396 = vmatprep.subr.bf16.mxu0 0
        %1397 = vmatpush1.bf16.msra.mxu0 0
        %1398 = vmatprep.subr.bf16.mxu0 0
        %1399 = vmatpush1.bf16.msra.mxu0 0
        %1400 = vmatprep.subr.bf16.mxu0 0
        %1401 = vmatpush1.bf16.msra.mxu0 0
        %1402 = vmatprep.subr.bf16.mxu0 0
        %1403 = vmatpush1.bf16.msra.mxu0 0
        %1404 = vmatprep.subr.bf16.mxu0 0
        %1405 = vmatpush1.bf16.msra.mxu0 0
        %1406 = vmatprep.subr.bf16.mxu0 0
        %1407 = vmatpush1.bf16.msra.mxu0 0
        %1408 = vmatprep.subr.bf16.mxu0 0
        %1409 = vmatpush1.bf16.msra.mxu0 0
        %1410 = vmatprep.subr.bf16.mxu0 0
        %1411 = vmatpush1.bf16.msra.mxu0 0
        %1412 = vmatprep.subr.bf16.mxu0 0
        %1413 = vmatpush1.bf16.msra.mxu0 0
        %1414 = vmatprep.subr.bf16.mxu0 0
        %1415 = vmatpush1.bf16.msra.mxu0 0
        %1416 = vmatprep.subr.bf16.mxu0 0
        %1417 = vmatpush1.bf16.msra.mxu0 0
        %1418 = vmatprep.subr.bf16.mxu0 0
        %1419 = vmatpush1.bf16.msra.mxu0 0
        %1420 = vmatprep.subr.bf16.mxu0 0
        %1421 = vmatpush1.bf16.msra.mxu0 0
        %1422 = vmatprep.mubr.bf16.mxu0 0
        %1423 = vmatmul.mubr.bf16.gmra.mrb[0].mxu0 %v1388
        %v1424 = vpop.f32.mrb[0].mxu0
        %v1425 = vadd.f32 %v1373, %v1424
        %v1426 = vpop.f32.mrb[0].mxu0
        %v1427 = vpop.f32.mrb[0].mxu0
        %v1428 = vpop.f32.mrb[0].mxu0
        %1429 = vdwg.mxu0
        %v1430 = vmax.f32 %v1425, 0.0
        %v1431 = vpack.c.bf16 %v1430, %v1430
        %v1432 = vld [vmem:[#allocation17] sm:$0xf]
        %v1433 = vld [vmem:[#allocation17 + $0x4] sm:$0xf]
        %v1434 = vld [vmem:[#allocation17 + $0x8] sm:$0xf]
        %v1435 = vld [vmem:[#allocation17 + $0xc] sm:$0xf]
        %v1436 = vld [vmem:[#allocation17 + $0x10] sm:$0xf]
        %v1437 = vld [vmem:[#allocation17 + $0x14] sm:$0xf]
        %v1438 = vld [vmem:[#allocation17 + $0x18] sm:$0xf]
        %v1439 = vld [vmem:[#allocation17 + $0x1c] sm:$0xf]
        %v1440 = vld [vmem:[#allocation17 + $0x20] sm:$0xf]
        %v1441 = vld [vmem:[#allocation17 + $0x24] sm:$0xf]
        %v1442 = vld [vmem:[#allocation17 + $0x28] sm:$0xf]
        %v1443 = vld [vmem:[#allocation17 + $0x2c] sm:$0xf]
        %v1444 = vld [vmem:[#allocation17 + $0x30] sm:$0xf]
        %v1445 = vld [vmem:[#allocation17 + $0x34] sm:$0xf]
        %v1446 = vld [vmem:[#allocation17 + $0x38] sm:$0xf]
        %v1447 = vld [vmem:[#allocation17 + $0x3c] sm:$0xf]
        %v1448 = vld [vmem:[#allocation19] sm:$0x1]
        %v1450 = vlaneseq
        %v1451 = vshrl.u32 %v1450, 7
        %v1452 = vsub.s32 0, %v1451
        %v1453 = vrot.slane %v1448, %v1452
        %v1471 = vunpack.c.l.b16 %v1432
        %v1472 = vunpack.c.l.b16 %v1433
        %v1473 = vunpack.c.l.b16 %v1434
        %v1474 = vunpack.c.l.b16 %v1435
        %v1475 = vunpack.c.l.b16 %v1436
        %v1476 = vunpack.c.l.b16 %v1437
        %v1477 = vunpack.c.l.b16 %v1438
        %v1478 = vunpack.c.l.b16 %v1439
        %v1479 = vunpack.c.l.b16 %v1440
        %v1480 = vunpack.c.l.b16 %v1441
        %v1481 = vunpack.c.l.b16 %v1442
        %v1482 = vunpack.c.l.b16 %v1443
        %v1483 = vunpack.c.l.b16 %v1444
        %v1484 = vunpack.c.l.b16 %v1445
        %v1485 = vunpack.c.l.b16 %v1446
        %v1486 = vunpack.c.l.b16 %v1447
        %v1487 = vpack.c.b16 %v1472, %v1471
        %v1488 = vpack.c.b16 %v1474, %v1473
        %v1489 = vpack.c.b16 %v1476, %v1475
        %v1490 = vpack.c.b16 %v1478, %v1477
        %v1491 = vpack.c.b16 %v1480, %v1479
        %v1492 = vpack.c.b16 %v1482, %v1481
        %v1493 = vpack.c.b16 %v1484, %v1483
        %v1494 = vpack.c.b16 %v1486, %v1485
        %1503 = vmatprep.subr.bf16.mxu0 0
        %1504 = vmatpush1.bf16.msra.mxu0 %v1487
        %1505 = vmatprep.subr.bf16.mxu0 0
        %1506 = vmatpush1.bf16.msra.mxu0 %v1488
        %1507 = vmatprep.subr.bf16.mxu0 0
        %1508 = vmatpush1.bf16.msra.mxu0 %v1489
        %1509 = vmatprep.subr.bf16.mxu0 0
        %1510 = vmatpush1.bf16.msra.mxu0 %v1490
        %1511 = vmatprep.subr.bf16.mxu0 0
        %1512 = vmatpush1.bf16.msra.mxu0 %v1491
        %1513 = vmatprep.subr.bf16.mxu0 0
        %1514 = vmatpush1.bf16.msra.mxu0 %v1492
        %1515 = vmatprep.subr.bf16.mxu0 0
        %1516 = vmatpush1.bf16.msra.mxu0 %v1493
        %1517 = vmatprep.subr.bf16.mxu0 0
        %1518 = vmatpush1.bf16.msra.mxu0 %v1494
        %1519 = vmatprep.subr.bf16.mxu0 0
        %1520 = vmatpush1.bf16.msra.mxu0 0
        %1521 = vmatprep.subr.bf16.mxu0 0
        %1522 = vmatpush1.bf16.msra.mxu0 0
        %1523 = vmatprep.subr.bf16.mxu0 0
        %1524 = vmatpush1.bf16.msra.mxu0 0
        %1525 = vmatprep.subr.bf16.mxu0 0
        %1526 = vmatpush1.bf16.msra.mxu0 0
        %1527 = vmatprep.subr.bf16.mxu0 0
        %1528 = vmatpush1.bf16.msra.mxu0 0
        %1529 = vmatprep.subr.bf16.mxu0 0
        %1530 = vmatpush1.bf16.msra.mxu0 0
        %1531 = vmatprep.subr.bf16.mxu0 0
        %1532 = vmatpush1.bf16.msra.mxu0 0
        %1533 = vmatprep.subr.bf16.mxu0 0
        %1534 = vmatpush1.bf16.msra.mxu0 0
        %1535 = vmatprep.mubr.bf16.mxu0 0
        %1536 = vmatmul.mubr.bf16.gmra.mrb[0].mxu0 %v1431
        %v1537 = vpop.f32.mrb[0].mxu0
        %v1538 = vadd.f32 %v1453, %v1537
        %v1539 = vpop.f32.mrb[0].mxu0
        %v1540 = vpop.f32.mrb[0].mxu0
        %v1541 = vpop.f32.mrb[0].mxu0
        %1542 = vdwg.mxu0
        %v1543 = vadd.f32 %v1362, %v1538
        %v1544 = vsel %vm640, %v1543, 0.0
        %1545 = vadd.xlane.f32.xlu0 %v1544
        %v1546 = vpop.xlane.xlu0 %1545
        %v1547 = vmul.f32 %v1546, %v1336
        %v1548 = vsub.f32 %v1543, %v1547
        %v1549 = vmul.f32 %v1548, %v1548
        %v1550 = vsel %vm640, %v1549, 0.0
        %1551 = vadd.xlane.f32.xlu0 %v1550
        %v1552 = vpop.xlane.xlu0 %1551
        %v1553 = vmul.f32 %v1552, %v1336
        %v1554 = vadd.f32 %v1553, 1e-05
        %v1555 = vrsqrt.pop %v1554
        %v1556 = vmul.f32 %v1548, %v1555
        %v1557 = vld [vmem:[#allocation20] sm:$0x1]
        %v1559 = vlaneseq
        %v1560 = vshrl.u32 %v1559, 7
        %v1561 = vsub.s32 0, %v1560
        %v1562 = vrot.slane %v1557, %v1561
        %v1564 = vmul.f32 %v1556, %v1562
        %v1565 = vld [vmem:[#allocation22] sm:$0x1]
        %v1567 = vlaneseq
        %v1568 = vshrl.u32 %v1567, 7
        %v1569 = vsub.s32 0, %v1568
        %v1570 = vrot.slane %v1565, %v1569
        %v1572 = vadd.f32 %v1564, %v1570
        %1573 = vst.msk [vmem:[%s613] sm:$0xff] %vm640, %v1572
        %s1574 = sand.u32 %s322, 1
        %s1575 = scalar_lea.sflag [#allocation4], %s1574
        %s1576 = sand.u32 %s322, 1
        %s1577 = smul.addr %s1576, 8
        %s1578 = scalar_lea.vmem [#allocation23], %s1577
        // Predicated region
        $region125: #{tpu_custom_call.1} parent=71 // pred_check
          %p1579 = pneg %p332
        $region126: #{tpu_custom_call.1} parent=71 // pred_check_branch
          %1581 = sbr.rel (%p1579) target = $region128
        $region127: #{tpu_custom_call.1} parent=71 // pred_region
          %s1583 = ssub.s32 128, 128
          %1584 = vsyncadd %s1575, %s1583
          %s1585 = smul.addr %s36, 128
          %s1586 = scalar_lea.hbm %s13, %s1585
          %s1588 = sshll.u32 %s1578, 4
          %s1589 = int_to_ptr.vmem [resolvable:$true] %s1588
          %1591 = dma.vmem_to_hbm [thread:$0]  %s1589, 128, %s1586, %s1575
        $region128: #{tpu_custom_call.1} parent=71 // pred_fallthru
          _
      $region72: #{tpu_custom_call.1} parent=5 // pred_fallthru
        _
      %p1592 = scmp.le.s32.totalorder 2, %s31
      // Predicated region
      $region129: #{tpu_custom_call.1} parent=5 // pred_check
        %p1593 = pneg %p1592
      $region130: #{tpu_custom_call.1} parent=5 // pred_check_branch
        %1595 = sbr.rel (%p1593) target = $region132
      $region131: #{tpu_custom_call.1} parent=5 // pred_region
        %s1596 = ssub.s32 %s31, 2
        // Predicated region
        $region133: #{tpu_custom_call.1} parent=131 // pred_check
          %p1597 = pneg %p338
        $region134: #{tpu_custom_call.1} parent=131 // pred_check_branch
          %1599 = sbr.rel (%p1597) target = $region136
        $region135: #{tpu_custom_call.1} parent=131 // pred_region
          %s1600 = sand.u32 %s323, 1
          %s1601 = scalar_lea.sflag [#allocation4], %s1600
          %s1602 = sand.u32 %s323, 1
          %s1603 = smul.addr %s1602, 8
          %s1604 = scalar_lea.vmem [#allocation23], %s1603
          %1605 = dma.done %s1601, 128
        $region136: #{tpu_custom_call.1} parent=131 // pred_fallthru
          _
      $region132: #{tpu_custom_call.1} parent=5 // pred_fallthru
        _
    $region6: #{tpu_custom_call.1} parent=1 // loop_footer
      %s35 = sadd.s32 1, %s31
    $region7: #{tpu_custom_call.1} parent=1 // loop_footer_branch
      %30 = sbr.rel target = $region3
    $region8: #{tpu_custom_call.1} parent=1 // loop_exit
      _
    %1606 = vsyncpa [#allocation3], 1
    %s1607 = scalar_lea.sflag [#allocation3], 1
    %1608 = vsyncpa %s1607, 1
    %1609 = vsyncpa [#allocation6], 1
    %1610 = vsyncpa [#allocation9], 1
    %1611 = vsyncpa [#allocation12], 1
    %1612 = vsyncpa [#allocation15], 1
    %1613 = vsyncpa [#allocation18], 1
    %1614 = vsyncpa [#allocation21], 1
    %1615 = vsyncpa [#allocation4], 1
    %s1616 = scalar_lea.sflag [#allocation4], 1
    %1617 = vsyncpa %s1616, 1

</llo_original>
